<compile_context>
chip_gen: v7x
topology: tpu7x:2x2x1
jax: 0.10.0
libtpu: 0.0.40
codegen_flags: <defaults>
</compile_context>

<pallas_src>
import functools

import numpy as np
import jax
import jax.numpy as jnp
from jax import lax
from jax.experimental import pallas as pl
from jax.experimental.pallas import tpu as pltpu


# --------------------------- fused Pallas kernel ----------------------------

def _fused_kernel(x_ref, w1_ref, b1_ref, w2_ref, b2_ref,
                  wf1_ref, bf1_ref, wf2_ref, bf2_ref,
                  out_ref, p1_scr, y2_scr):
    f32 = jnp.float32
    BB = x_ref.shape[0]                                   # samples per grid step

    # ---- conv1 (+2x2 pool taps baked into rows/cols): ONE matmul, M = BB*16 -
    # rows: b*16 + dy*8 + ph        cols: dx*256 + pw*32 + oc
    x = x_ref[...].reshape(BB * 16, 512)
    y1 = jnp.dot(x, w1_ref[...], preferred_element_type=f32) + b1_ref[...]
    y1 = jnp.maximum(y1, 0.0).reshape(BB, 2, 8, 512)       # [b, dy, ph, dx*256+pw*32+oc]
    # maxpool1: dy = aligned row groups, dx = aligned lane halves
    p = jnp.maximum(y1[:, 0], y1[:, 1])                    # (BB, 8, 512)
    p1 = jnp.maximum(p[:, :, 0:256], p[:, :, 256:512])     # (BB, 8, 256)  [b, ph, pw*32+c]

    p1_scr[:, 0:8, :] = p1
    p1_scr[:, 8:16, :] = jnp.zeros_like(p1)                # keep shifted windows finite

    # ---- conv2: ONE K=1280 matmul over the 5 height taps, M = BB*8 ----------
    # lhs2[b, oh, kh*256 + pw*32 + ci] = p1[b, oh+kh, pw*32+ci]  (rows oh>=4 = junk)
    lhs2 = jnp.concatenate([p1_scr[:, kh:kh + 8, :] for kh in range(5)], axis=-1)
    y2 = jnp.dot(lhs2.reshape(BB * 8, 1280), w2_ref[...],
                 preferred_element_type=f32) + b2_ref[...]
    y2 = jnp.maximum(y2, 0.0)                              # (BB*8, 128) [b*8+oh, dx*64+qw*32+oc]

    # ---- maxpool2: dx = aligned lane halves, oh pairs via a tiny scratch ----
    y2_scr[...] = jnp.maximum(y2[:, 0:64], y2[:, 64:128]).reshape(BB, 8, 64)
    qh0 = jnp.max(y2_scr[:, 0:2, :], axis=1)               # (BB, 64)  pooled qh = 0
    qh1 = jnp.max(y2_scr[:, 2:4, :], axis=1)               # (BB, 64)  pooled qh = 1
    fcin = jnp.concatenate([qh0, qh1], axis=-1)            # (BB, 128) [qh*64+qw*32+c]

    # ---- fc1 (tanh, NCHW flatten folded into wf1) + fc2 (128-lane padded) ---
    h = jnp.tanh(jnp.dot(fcin, wf1_ref[...], preferred_element_type=f32)
                 + bf1_ref[...])                           # (BB, F)
    out_ref[...] = jnp.dot(h, wf2_ref[...], preferred_element_type=f32) + bf2_ref[...]


def _const_spec(arr):
    nd = arr.ndim
    return pl.BlockSpec(arr.shape, lambda g, _nd=nd: (0,) * _nd)


def _fused_cnn_call(lhs1, W1, b1, W2, b2, Wf1, bf1, Wf2, bf2, BB):
    Bp = lhs1.shape[0]                                     # padded batch (multiple of BB)
    G = Bp // BB
    return pl.pallas_call(
        _fused_kernel,
        out_shape=jax.ShapeDtypeStruct((Bp, 128), jnp.float32),
        grid=(G,),
        in_specs=[
            pl.BlockSpec((BB, 16, 512), lambda g: (g, 0, 0)),
            _const_spec(W1), _const_spec(b1),
            _const_spec(W2), _const_spec(b2),
            _const_spec(Wf1), _const_spec(bf1),
            _const_spec(Wf2), _const_spec(bf2),
        ],
        out_specs=pl.BlockSpec((BB, 128), lambda g: (g, 0)),
        scratch_shapes=[pltpu.VMEM((BB, 16, 256), jnp.float32),   # conv2 shift windows
                        pltpu.VMEM((BB, 8, 64), jnp.float32)],    # pool2 row windows
        compiler_params=pltpu.CompilerParams(
            dimension_semantics=("parallel",)),
    )(lhs1, W1, b1, W2, b2, Wf1, bf1, Wf2, bf2)


# ------------------------- inference-form weight packing --------------------

def pack_params(params):
    """One-time repack of the PyTorch-layout weights into the fused-kernel layout."""
    f32 = jnp.float32
    w1, b1 = params["w_conv1"], params["b_conv1"]      # (32, Cin, 5, 5), (32,)
    w2, b2 = params["w_conv2"], params["b_conv2"]      # (32, 32, 5, 5), (32,)
    wf1, bf1 = params["w_fc1"], params["b_fc1"]        # (128, F), (F,)
    wf2, bf2 = params["w_fc2"], params["b_fc2"]        # (F, n_out), (n_out,)
    cin = w1.shape[1]
    n_out = wf2.shape[1]

    # conv1+pool1 weight: rows k = kh*(20*cin) + w*cin + ci (padded to 512),
    #                     cols   = dx*256 + pw*32 + oc
    w1_t = jnp.transpose(w1, (2, 3, 1, 0))             # (kh, kw, ci, oc)
    W1 = jnp.zeros((5, 20, cin, 2, 8, 32), f32)
    for dx in range(2):
        for pw in range(8):
            for kw in range(5):
                W1 = W1.at[:, 2 * pw + dx + kw, :, dx, pw, :].set(w1_t[:, kw, :, :])
    W1 = W1.reshape(5 * 20 * cin, 512)
    W1 = jnp.pad(W1, ((0, 512 - W1.shape[0]), (0, 0)))          # K -> 512
    b1c = jnp.tile(b1, 16).reshape(1, 512)

    # conv2 weight (single K=1280 matmul): rows = kh*256 + pw*32 + ci,
    #                                      cols = dx*64 + qw*32 + oc  (ow = 2*qw + dx)
    w2_t = jnp.transpose(w2, (2, 3, 1, 0))             # (kh, kw, ci, oc)
    W2 = jnp.zeros((5, 8, 32, 2, 2, 32), f32)
    for dx in range(2):
        for qw in range(2):
            for kw in range(5):
                W2 = W2.at[:, 2 * qw + dx + kw, :, dx, qw, :].set(w2_t[:, kw, :, :])
    W2 = W2.reshape(5 * 256, 128)
    b2c = jnp.tile(b2, 4).reshape(1, 128)

    # fc1: fold the NCHW .view(B,-1) flatten (f = c*4 + qh*2 + qw) and the
    #      kernel's lane order (qh*64 + qw*32 + c) into one (128, F) weight.
    F = wf1.shape[1]
    Wf1 = jnp.transpose(wf1.reshape(32, 2, 2, F), (1, 2, 0, 3)).reshape(128, F)
    bf1c = bf1.reshape(1, F)

    # fc2: pad output to 128 lanes (sliced back to n_out in the wrapper).
    Wf2 = jnp.pad(wf2, ((0, 0), (0, 128 - n_out)))
    bf2c = jnp.pad(bf2, (0, 128 - n_out)).reshape(1, 128)

    return (W1, b1c, W2, b2c, Wf1, bf1c, Wf2, bf2c)


# ------------------------------ forward pass --------------------------------

# lhs row r = dy*8 + ph needs padded-input rows 2*ph + dy + kh, kh = 0..4
_ROW_IDX = (2 * np.arange(8)[None, :, None]
            + np.arange(2)[:, None, None]
            + np.arange(5)[None, None, :]).reshape(16, 5)


@functools.partial(jax.jit, static_argnames=("n_out",))
def cnn_forward(packed, x_nchw, n_out=10):
    B, cin, H, W = x_nchw.shape
    # BB samples per grid step: 16 fills the 256-row MXU on v6e/v7x; tiny
    # batches fall back to one step with minimal padding.
    BB = min(16, pl.next_power_of_2(B))
    Bp = pl.cdiv(B, BB) * BB

    x = jnp.transpose(x_nchw, (0, 2, 3, 1))                      # NHWC
    x = jnp.pad(x, ((0, 0), (2, 2), (2, 2), (0, 0)))             # (B, 20, 20, cin)
    x2d = x.reshape(B, 20, 20 * cin)
    # height-only im2col at pool stride: (B, 16, 5*20*cin), lane+batch padded
    lhs1 = x2d[:, _ROW_IDX, :].reshape(B, 16, 5 * 20 * cin)
    lhs1 = jnp.pad(lhs1, ((0, Bp - B), (0, 0), (0, 512 - lhs1.shape[-1])))
    out = _fused_cnn_call(lhs1, *packed, BB)                     # (Bp, 128)
    return out[:B, :n_out]


# ----------------------------- parameter init -------------------------------

def _xavier_uniform(key, shape, fan_in, fan_out, gain=1.0):
    bound = gain * (6.0 / (fan_in + fan_out)) ** 0.5
    return jax.random.uniform(key, shape, jnp.float32, -bound, bound)


def init_params(key, n_in, in_features, out_features, n_out):
    k1, k2, k3, k4 = jax.random.split(key, 4)
    relu_gain = 2.0 ** 0.5
    return dict(
        w_conv1=_xavier_uniform(k1, (32, n_in, 5, 5), n_in * 25, 32 * 25, relu_gain),
        b_conv1=jnp.zeros((32,), jnp.float32),
        w_conv2=_xavier_uniform(k2, (32, 32, 5, 5), 32 * 25, 32 * 25, relu_gain),
        b_conv2=jnp.zeros((32,), jnp.float32),
        w_fc1=_xavier_uniform(k3, (in_features, out_features), in_features, out_features),
        b_fc1=jnp.zeros((out_features,), jnp.float32),
        w_fc2=_xavier_uniform(k4, (out_features, n_out), out_features, n_out),
        b_fc2=jnp.zeros((n_out,), jnp.float32),
    )


# --------------------------- pure-JAX reference -----------------------------

def cnn_reference(params, x_nchw):
    hp = lax.Precision.HIGHEST
    x = jnp.transpose(x_nchw, (0, 2, 3, 1))

    def conv(x, w, b, pad):
        y = lax.conv_general_dilated(
            x, jnp.transpose(w, (2, 3, 1, 0)), (1, 1),
            [(pad, pad), (pad, pad)],
            dimension_numbers=("NHWC", "HWIO", "NHWC"), precision=hp)
        return jnp.maximum(y + b, 0.0)

    def pool(x):
        return lax.reduce_window(x, -jnp.inf, lax.max,
                                 (1, 2, 2, 1), (1, 2, 2, 1), "VALID")

    x = pool(conv(x, params["w_conv1"], params["b_conv1"], 2))
    x = pool(conv(x, params["w_conv2"], params["b_conv2"], 0))
    x = jnp.transpose(x, (0, 3, 1, 2)).reshape(x.shape[0], -1)   # PyTorch .view order
    x = jnp.tanh(jnp.dot(x, params["w_fc1"], precision=hp) + params["b_fc1"])
    return jnp.dot(x, params["w_fc2"], precision=hp) + params["b_fc2"]


if __name__ == "__main__":
    # batch=2, n_in=4 channels, 16x16 spatial.
    # 16x16 --conv1(pad2)--> 16x16x32 --pool--> 8x8 --conv2(k5)--> 4x4 --pool--> 2x2
    # flatten: in_features = 32*2*2 = 128; out_features = 32; n_out = 10.
    B, n_in, H, W = 2, 4, 16, 16
    in_features, out_features, n_out = 32 * 2 * 2, 32, 10

    key = jax.random.PRNGKey(0)
    pkey, xkey = jax.random.split(key)
    params = init_params(pkey, n_in, in_features, out_features, n_out)
    x = jax.random.normal(xkey, (B, n_in, H, W), jnp.float32)

    packed = pack_params(params)   # one-time inference-form weight repacking

    out = jax.block_until_ready(cnn_forward(packed, x, n_out=n_out))
    ref = jax.block_until_ready(cnn_reference(params, x))

    assert out.shape == (B, n_out), out.shape
    assert jnp.allclose(out, ref, atol=1e-4, rtol=1e-4), "Pallas result != reference"
    print("KERNEL_OK")
</pallas_src>

<mosaic_0001>
module attributes {stable_mosaic.version = 11 : i64} {
  func.func @_fused_kernel(%arg0: i32, %arg1: memref<2x16x512xf32, #tpu.memory_space<vmem>>, %arg2: memref<512x512xf32, #tpu.memory_space<vmem>>, %arg3: memref<1x512xf32, #tpu.memory_space<vmem>>, %arg4: memref<1280x128xf32, #tpu.memory_space<vmem>>, %arg5: memref<1x128xf32, #tpu.memory_space<vmem>>, %arg6: memref<128x32xf32, #tpu.memory_space<vmem>>, %arg7: memref<1x32xf32, #tpu.memory_space<vmem>>, %arg8: memref<32x128xf32, #tpu.memory_space<vmem>>, %arg9: memref<1x128xf32, #tpu.memory_space<vmem>>, %arg10: memref<2x128xf32, #tpu.memory_space<vmem>>, %arg11: memref<2x16x256xf32, #tpu.memory_space<vmem>>, %arg12: memref<2x8x64xf32, #tpu.memory_space<vmem>>) attributes {dimension_semantics = [#tpu.dimension_semantics<parallel>], iteration_bounds = array<i64: 1>, scalar_prefetch = 0 : i64, scratch_operands = 2 : i64, tpu.core_type = #tpu.core_type<tc>, window_params = [{transform_indices = @transform_0, window_bounds = array<i64: 2, 16, 512>}, {pipeline_mode = #tpu.pipeline_mode<synchronous>, transform_indices = @transform_1, window_bounds = array<i64: 512, 512>}, {pipeline_mode = #tpu.pipeline_mode<synchronous>, transform_indices = @transform_2, window_bounds = array<i64: 1, 512>}, {pipeline_mode = #tpu.pipeline_mode<synchronous>, transform_indices = @transform_3, window_bounds = array<i64: 1280, 128>}, {pipeline_mode = #tpu.pipeline_mode<synchronous>, transform_indices = @transform_4, window_bounds = array<i64: 1, 128>}, {pipeline_mode = #tpu.pipeline_mode<synchronous>, transform_indices = @transform_5, window_bounds = array<i64: 128, 32>}, {pipeline_mode = #tpu.pipeline_mode<synchronous>, transform_indices = @transform_6, window_bounds = array<i64: 1, 32>}, {pipeline_mode = #tpu.pipeline_mode<synchronous>, transform_indices = @transform_7, window_bounds = array<i64: 32, 128>}, {pipeline_mode = #tpu.pipeline_mode<synchronous>, transform_indices = @transform_8, window_bounds = array<i64: 1, 128>}, {transform_indices = @transform_9, window_bounds = array<i64: 2, 128>}]} {
    %c0 = arith.constant 0 : index
    %c0_0 = arith.constant 0 : index
    %c0_1 = arith.constant 0 : index
    %0 = vector.load %arg1[%c0, %c0_0, %c0_1] : memref<2x16x512xf32, #tpu.memory_space<vmem>>, vector<2x16x512xf32>
    %1 = vector.shape_cast %0 : vector<2x16x512xf32> to vector<32x512xf32>
    %c0_2 = arith.constant 0 : index
    %c0_3 = arith.constant 0 : index
    %2 = vector.load %arg2[%c0_2, %c0_3] : memref<512x512xf32, #tpu.memory_space<vmem>>, vector<512x512xf32>
    %cst = arith.constant dense<0.000000e+00> : vector<32x512xf32>
    %3 = tpu.matmul %1, %2, %cst {dimension_numbers = #tpu.dot_dimension_numbers<[1], [0], [0], [1], [0, 0, 1, 1], [], []>} : vector<32x512xf32>, vector<512x512xf32>, vector<32x512xf32> -> vector<32x512xf32>
    %c0_4 = arith.constant 0 : index
    %c0_5 = arith.constant 0 : index
    %4 = vector.load %arg3[%c0_4, %c0_5] : memref<1x512xf32, #tpu.memory_space<vmem>>, vector<1x512xf32>
    %5 = vector.broadcast %4 : vector<1x512xf32> to vector<32x512xf32>
    %6 = arith.addf %3, %5 : vector<32x512xf32>
    %cst_6 = arith.constant 0.000000e+00 : f32
    %7 = vector.broadcast %cst_6 : f32 to vector<32x512xf32>
    %8 = arith.maximumf %6, %7 : vector<32x512xf32>
    %9 = vector.shape_cast %8 : vector<32x512xf32> to vector<2x2x8x512xf32>
    %10 = vector.extract_strided_slice %9 {offsets = [0, 0, 0, 0], sizes = [2, 1, 8, 512], strides = [1, 1, 1, 1]} : vector<2x2x8x512xf32> to vector<2x1x8x512xf32>
    %11 = vector.shape_cast %10 : vector<2x1x8x512xf32> to vector<2x8x512xf32>
    %12 = vector.extract_strided_slice %9 {offsets = [0, 1, 0, 0], sizes = [2, 1, 8, 512], strides = [1, 1, 1, 1]} : vector<2x2x8x512xf32> to vector<2x1x8x512xf32>
    %13 = vector.shape_cast %12 : vector<2x1x8x512xf32> to vector<2x8x512xf32>
    %14 = arith.maximumf %11, %13 : vector<2x8x512xf32>
    %15 = vector.extract_strided_slice %14 {offsets = [0, 0, 0], sizes = [2, 8, 256], strides = [1, 1, 1]} : vector<2x8x512xf32> to vector<2x8x256xf32>
    %16 = vector.extract_strided_slice %14 {offsets = [0, 0, 256], sizes = [2, 8, 256], strides = [1, 1, 1]} : vector<2x8x512xf32> to vector<2x8x256xf32>
    %17 = arith.maximumf %15, %16 : vector<2x8x256xf32>
    %c0_7 = arith.constant 0 : index
    %c0_8 = arith.constant 0 : index
    %c0_9 = arith.constant 0 : index
    %18 = vector.load %arg11[%c0_7, %c0_8, %c0_9] : memref<2x16x256xf32, #tpu.memory_space<vmem>>, vector<2x8x256xf32>
    tpu.vector_store %arg11[%c0_7, %c0_8, %c0_9], %17 {strides = array<i32>} : memref<2x16x256xf32, #tpu.memory_space<vmem>>, vector<2x8x256xf32>,
    %cst_10 = arith.constant 0.000000e+00 : f32
    %19 = vector.broadcast %cst_10 : f32 to vector<2x8x256xf32>
    %c0_11 = arith.constant 0 : index
    %c8 = arith.constant 8 : index
    %c0_12 = arith.constant 0 : index
    %20 = vector.load %arg11[%c0_11, %c8, %c0_12] : memref<2x16x256xf32, #tpu.memory_space<vmem>>, vector<2x8x256xf32>
    tpu.vector_store %arg11[%c0_11, %c8, %c0_12], %19 {strides = array<i32>} : memref<2x16x256xf32, #tpu.memory_space<vmem>>, vector<2x8x256xf32>,
    %c0_13 = arith.constant 0 : index
    %c0_14 = arith.constant 0 : index
    %c0_15 = arith.constant 0 : index
    %21 = vector.load %arg11[%c0_13, %c0_14, %c0_15] : memref<2x16x256xf32, #tpu.memory_space<vmem>>, vector<2x8x256xf32>
    %c0_16 = arith.constant 0 : index
    %c1 = arith.constant 1 : index
    %c0_17 = arith.constant 0 : index
    %22 = vector.load %arg11[%c0_16, %c1, %c0_17] : memref<2x16x256xf32, #tpu.memory_space<vmem>>, vector<2x8x256xf32>
    %c0_18 = arith.constant 0 : index
    %c2 = arith.constant 2 : index
    %c0_19 = arith.constant 0 : index
    %23 = vector.load %arg11[%c0_18, %c2, %c0_19] : memref<2x16x256xf32, #tpu.memory_space<vmem>>, vector<2x8x256xf32>
    %c0_20 = arith.constant 0 : index
    %c3 = arith.constant 3 : index
    %c0_21 = arith.constant 0 : index
    %24 = vector.load %arg11[%c0_20, %c3, %c0_21] : memref<2x16x256xf32, #tpu.memory_space<vmem>>, vector<2x8x256xf32>
    %c0_22 = arith.constant 0 : index
    %c4 = arith.constant 4 : index
    %c0_23 = arith.constant 0 : index
    %25 = vector.load %arg11[%c0_22, %c4, %c0_23] : memref<2x16x256xf32, #tpu.memory_space<vmem>>, vector<2x8x256xf32>
    %26 = tpu.concatenate %21, %22, %23, %24, %25 in 2 : vector<2x8x256xf32>, vector<2x8x256xf32>, vector<2x8x256xf32>, vector<2x8x256xf32>, vector<2x8x256xf32> -> vector<2x8x1280xf32>
    %27 = vector.shape_cast %26 : vector<2x8x1280xf32> to vector<16x1280xf32>
    %c0_24 = arith.constant 0 : index
    %c0_25 = arith.constant 0 : index
    %28 = vector.load %arg4[%c0_24, %c0_25] : memref<1280x128xf32, #tpu.memory_space<vmem>>, vector<1280x128xf32>
    %cst_26 = arith.constant dense<0.000000e+00> : vector<16x128xf32>
    %29 = tpu.matmul %27, %28, %cst_26 {dimension_numbers = #tpu.dot_dimension_numbers<[1], [0], [0], [1], [0, 0, 1, 1], [], []>} : vector<16x1280xf32>, vector<1280x128xf32>, vector<16x128xf32> -> vector<16x128xf32>
    %c0_27 = arith.constant 0 : index
    %c0_28 = arith.constant 0 : index
    %30 = vector.load %arg5[%c0_27, %c0_28] : memref<1x128xf32, #tpu.memory_space<vmem>>, vector<1x128xf32>
    %31 = vector.broadcast %30 : vector<1x128xf32> to vector<16x128xf32>
    %32 = arith.addf %29, %31 : vector<16x128xf32>
    %cst_29 = arith.constant 0.000000e+00 : f32
    %33 = vector.broadcast %cst_29 : f32 to vector<16x128xf32>
    %34 = arith.maximumf %32, %33 : vector<16x128xf32>
    %35 = vector.extract_strided_slice %34 {offsets = [0, 0], sizes = [16, 64], strides = [1, 1]} : vector<16x128xf32> to vector<16x64xf32>
    %36 = vector.extract_strided_slice %34 {offsets = [0, 64], sizes = [16, 64], strides = [1, 1]} : vector<16x128xf32> to vector<16x64xf32>
    %37 = arith.maximumf %35, %36 : vector<16x64xf32>
    %38 = vector.shape_cast %37 : vector<16x64xf32> to vector<2x8x64xf32>
    %c0_30 = arith.constant 0 : index
    %c0_31 = arith.constant 0 : index
    %c0_32 = arith.constant 0 : index
    %39 = vector.load %arg12[%c0_30, %c0_31, %c0_32] : memref<2x8x64xf32, #tpu.memory_space<vmem>>, vector<2x8x64xf32>
    tpu.vector_store %arg12[%c0_30, %c0_31, %c0_32], %38 {strides = array<i32>} : memref<2x8x64xf32, #tpu.memory_space<vmem>>, vector<2x8x64xf32>,
    %c0_33 = arith.constant 0 : index
    %c0_34 = arith.constant 0 : index
    %c0_35 = arith.constant 0 : index
    %40 = vector.load %arg12[%c0_33, %c0_34, %c0_35] : memref<2x8x64xf32, #tpu.memory_space<vmem>>, vector<2x2x64xf32>
    %cst_36 = arith.constant dense<0xFF800000> : vector<2x64xf32>
    %41 = vector.multi_reduction <maximumf>, %40, %cst_36 [1] : vector<2x2x64xf32> to vector<2x64xf32>
    %c0_37 = arith.constant 0 : index
    %c2_38 = arith.constant 2 : index
    %c0_39 = arith.constant 0 : index
    %42 = vector.load %arg12[%c0_37, %c2_38, %c0_39] : memref<2x8x64xf32, #tpu.memory_space<vmem>>, vector<2x2x64xf32>
    %cst_40 = arith.constant dense<0xFF800000> : vector<2x64xf32>
    %43 = vector.multi_reduction <maximumf>, %42, %cst_40 [1] : vector<2x2x64xf32> to vector<2x64xf32>
    %44 = tpu.concatenate %41, %43 in 1 : vector<2x64xf32>, vector<2x64xf32> -> vector<2x128xf32>
    %c0_41 = arith.constant 0 : index
    %c0_42 = arith.constant 0 : index
    %45 = vector.load %arg6[%c0_41, %c0_42] : memref<128x32xf32, #tpu.memory_space<vmem>>, vector<128x32xf32>
    %cst_43 = arith.constant dense<0.000000e+00> : vector<2x32xf32>
    %46 = tpu.matmul %44, %45, %cst_43 {dimension_numbers = #tpu.dot_dimension_numbers<[1], [0], [0], [1], [0, 0, 1, 1], [], []>} : vector<2x128xf32>, vector<128x32xf32>, vector<2x32xf32> -> vector<2x32xf32>
    %c0_44 = arith.constant 0 : index
    %c0_45 = arith.constant 0 : index
    %47 = vector.load %arg7[%c0_44, %c0_45] : memref<1x32xf32, #tpu.memory_space<vmem>>, vector<1x32xf32>
    %48 = vector.broadcast %47 : vector<1x32xf32> to vector<2x32xf32>
    %49 = arith.addf %46, %48 : vector<2x32xf32>
    %50 = math.tanh %49 : vector<2x32xf32>
    %c0_46 = arith.constant 0 : index
    %c0_47 = arith.constant 0 : index
    %51 = vector.load %arg8[%c0_46, %c0_47] : memref<32x128xf32, #tpu.memory_space<vmem>>, vector<32x128xf32>
    %cst_48 = arith.constant dense<0.000000e+00> : vector<2x128xf32>
    %52 = tpu.matmul %50, %51, %cst_48 {dimension_numbers = #tpu.dot_dimension_numbers<[1], [0], [0], [1], [0, 0, 1, 1], [], []>} : vector<2x32xf32>, vector<32x128xf32>, vector<2x128xf32> -> vector<2x128xf32>
    %c0_49 = arith.constant 0 : index
    %c0_50 = arith.constant 0 : index
    %53 = vector.load %arg9[%c0_49, %c0_50] : memref<1x128xf32, #tpu.memory_space<vmem>>, vector<1x128xf32>
    %54 = vector.broadcast %53 : vector<1x128xf32> to vector<2x128xf32>
    %55 = arith.addf %52, %54 : vector<2x128xf32>
    %c0_51 = arith.constant 0 : index
    %c0_52 = arith.constant 0 : index
    %56 = vector.load %arg10[%c0_51, %c0_52] : memref<2x128xf32, #tpu.memory_space<vmem>>, vector<2x128xf32>
    tpu.vector_store %arg10[%c0_51, %c0_52], %55 {strides = array<i32>} : memref<2x128xf32, #tpu.memory_space<vmem>>, vector<2x128xf32>,
    return
  }
  func.func @transform_0(%arg0: i32) -> (i32, i32, i32) {
    %c0_i32 = arith.constant 0 : i32
    %c0_i32_0 = arith.constant 0 : i32
    %c0_i32_1 = arith.constant 0 : i32
    return %arg0, %c0_i32, %c0_i32_0 : i32, i32, i32
  }
  func.func @transform_1(%arg0: i32) -> (i32, i32) {
    %c0_i32 = arith.constant 0 : i32
    %c0_i32_0 = arith.constant 0 : i32
    %c0_i32_1 = arith.constant 0 : i32
    return %c0_i32, %c0_i32_0 : i32, i32
  }
  func.func @transform_2(%arg0: i32) -> (i32, i32) {
    %c0_i32 = arith.constant 0 : i32
    %c0_i32_0 = arith.constant 0 : i32
    %c0_i32_1 = arith.constant 0 : i32
    return %c0_i32, %c0_i32_0 : i32, i32
  }
  func.func @transform_3(%arg0: i32) -> (i32, i32) {
    %c0_i32 = arith.constant 0 : i32
    %c0_i32_0 = arith.constant 0 : i32
    %c0_i32_1 = arith.constant 0 : i32
    return %c0_i32, %c0_i32_0 : i32, i32
  }
  func.func @transform_4(%arg0: i32) -> (i32, i32) {
    %c0_i32 = arith.constant 0 : i32
    %c0_i32_0 = arith.constant 0 : i32
    %c0_i32_1 = arith.constant 0 : i32
    return %c0_i32, %c0_i32_0 : i32, i32
  }
  func.func @transform_5(%arg0: i32) -> (i32, i32) {
    %c0_i32 = arith.constant 0 : i32
    %c0_i32_0 = arith.constant 0 : i32
    %c0_i32_1 = arith.constant 0 : i32
    return %c0_i32, %c0_i32_0 : i32, i32
  }
  func.func @transform_6(%arg0: i32) -> (i32, i32) {
    %c0_i32 = arith.constant 0 : i32
    %c0_i32_0 = arith.constant 0 : i32
    %c0_i32_1 = arith.constant 0 : i32
    return %c0_i32, %c0_i32_0 : i32, i32
  }
  func.func @transform_7(%arg0: i32) -> (i32, i32) {
    %c0_i32 = arith.constant 0 : i32
    %c0_i32_0 = arith.constant 0 : i32
    %c0_i32_1 = arith.constant 0 : i32
    return %c0_i32, %c0_i32_0 : i32, i32
  }
  func.func @transform_8(%arg0: i32) -> (i32, i32) {
    %c0_i32 = arith.constant 0 : i32
    %c0_i32_0 = arith.constant 0 : i32
    %c0_i32_1 = arith.constant 0 : i32
    return %c0_i32, %c0_i32_0 : i32, i32
  }
  func.func @transform_9(%arg0: i32) -> (i32, i32) {
    %c0_i32 = arith.constant 0 : i32
    %c0_i32_0 = arith.constant 0 : i32
    return %arg0, %c0_i32 : i32, i32
  }
}

</mosaic_0001>

<llo_original>
// kernel: cnn_forward.1
$region0: #{cnn_forward.1}
  #allocation0 [shape = 'u32[]', space=smem, size = 0x4, offset = 0x4, fixed_abs, tag = 'smem constant byte address 0x4 - core index']
  #allocation1 [shape = 'u32[144,128]{1,0:T(1,128)}', space=vmem, size = 0x12000, scoped, tag = 'internal scratch']
  #allocation2 [shape = 'f32[2,16,256]{2,1,0:T(8,128)}', space=vmem, size = 0x8000, scoped, tag = 'scratch operand']
  #allocation3 [shape = 'f32[2,8,64]{2,1,0:T(8,128)}', space=vmem, size = 0x2000, scoped, tag = 'scratch operand']
  %s0 = inlined_call_operand.vmem [shape: f32[2,16,512], index: 0, kind: input, shape index: {}]
  %s1 = inlined_call_operand.vmem [shape: f32[512,512], index: 1, kind: input, shape index: {}]
  %s2 = inlined_call_operand.vmem [shape: f32[1,512], index: 2, kind: input, shape index: {}]
  %s3 = inlined_call_operand.hbm [shape: f32[1280,128], index: 3, kind: input, shape index: {}]
  %s4 = inlined_call_operand.vmem [shape: f32[1,128], index: 4, kind: input, shape index: {}]
  %s5 = inlined_call_operand.vmem [shape: f32[128,32], index: 5, kind: input, shape index: {}]
  %s6 = inlined_call_operand.vmem [shape: f32[1,32], index: 6, kind: input, shape index: {}]
  %s7 = inlined_call_operand.vmem [shape: f32[32,128], index: 7, kind: input, shape index: {}]
  %s8 = inlined_call_operand.vmem [shape: f32[1,128], index: 8, kind: input, shape index: {}]
  %s9 = inlined_call_operand.hbm [shape: f32[2,128], index: 9, kind: output, shape index: {}]
  %s10 = sld [smem:[#allocation0]]
  $region50: #{cnn_forward.1} parent=0
    _
  %s12 = ssub.s32 1, %s10
  %s13 = scalar_select 0, %s12, %s10
  $region1: #{cnn_forward.1} parent=0
    #allocation4 [shape = 'u8[655360]{0}', space=vmem, size = 0xa0000, scoped, tag = 'input window, operand 3, single buffered']
    #allocation5 [shape = 's32[1]{0}', space=sflag, size = 0x4, scoped, tag = 'scoped memory for cnn_forward.1']
    #allocation6 [shape = 's32[1]{0}', space=sflag, size = 0x4, scoped, tag = 'scoped memory for cnn_forward.1']
    #allocation7 [shape = 'u8[1024]{0}', space=vmem, size = 0x400, scoped, tag = 'output window, operand 0, single buffered']
    %14 = vsyncpa [#allocation5], 0
    %15 = vsyncpa [#allocation6], 0
    // Predicated region
    $region2: #{cnn_forward.1} parent=1 // pred_check
      _
    $region3: #{cnn_forward.1} parent=1 // pred_check_branch
      %17 = sbr.rel (0) target = $region5
    $region4: #{cnn_forward.1} parent=1 // pred_region
      _
    $region5: #{cnn_forward.1} parent=1 // pred_fallthru
      _
    // Predicated region
    $region6: #{cnn_forward.1} parent=1 // pred_check
      _
    $region7: #{cnn_forward.1} parent=1 // pred_check_branch
      %19 = sbr.rel (0) target = $region9
    $region8: #{cnn_forward.1} parent=1 // pred_region
      _
    $region9: #{cnn_forward.1} parent=1 // pred_fallthru
      _
    // Predicated region
    $region10: #{cnn_forward.1} parent=1 // pred_check
      _
    $region11: #{cnn_forward.1} parent=1 // pred_check_branch
      %21 = sbr.rel (0) target = $region13
    $region12: #{cnn_forward.1} parent=1 // pred_region
      _
    $region13: #{cnn_forward.1} parent=1 // pred_fallthru
      _
    // Predicated region
    $region14: #{cnn_forward.1} parent=1 // pred_check
      _
    $region15: #{cnn_forward.1} parent=1 // pred_check_branch
      %23 = sbr.rel (0) target = $region17
    $region16: #{cnn_forward.1} parent=1 // pred_region
      %s25 = ssub.s32 20480, 20480
      %26 = vsyncadd [#allocation5], %s25
      %s27 = sshll.u32 [#allocation4], 4
      %s28 = int_to_ptr.vmem [resolvable:$true] %s27
      %33 = dma.hbm_to_vmem [thread:$0]  %s3, 20480, %s28, [#allocation5], 128, 128, 8
    $region17: #{cnn_forward.1} parent=1 // pred_fallthru
      _
    // Predicated region
    $region18: #{cnn_forward.1} parent=1 // pred_check
      _
    $region19: #{cnn_forward.1} parent=1 // pred_check_branch
      %35 = sbr.rel (0) target = $region21
    $region20: #{cnn_forward.1} parent=1 // pred_region
      _
    $region21: #{cnn_forward.1} parent=1 // pred_fallthru
      _
    // Predicated region
    $region22: #{cnn_forward.1} parent=1 // pred_check
      _
    $region23: #{cnn_forward.1} parent=1 // pred_check_branch
      %37 = sbr.rel (0) target = $region25
    $region24: #{cnn_forward.1} parent=1 // pred_region
      _
    $region25: #{cnn_forward.1} parent=1 // pred_fallthru
      _
    // Predicated region
    $region26: #{cnn_forward.1} parent=1 // pred_check
      _
    $region27: #{cnn_forward.1} parent=1 // pred_check_branch
      %39 = sbr.rel (0) target = $region29
    $region28: #{cnn_forward.1} parent=1 // pred_region
      _
    $region29: #{cnn_forward.1} parent=1 // pred_fallthru
      _
    // Predicated region
    $region30: #{cnn_forward.1} parent=1 // pred_check
      _
    $region31: #{cnn_forward.1} parent=1 // pred_check_branch
      %41 = sbr.rel (0) target = $region33
    $region32: #{cnn_forward.1} parent=1 // pred_region
      _
    $region33: #{cnn_forward.1} parent=1 // pred_fallthru
      _
    // Predicated region
    $region34: #{cnn_forward.1} parent=1 // pred_check
      _
    $region35: #{cnn_forward.1} parent=1 // pred_check_branch
      %43 = sbr.rel (0) target = $region37
    $region36: #{cnn_forward.1} parent=1 // pred_region
      _
    $region37: #{cnn_forward.1} parent=1 // pred_fallthru
      _
    // Predicated region
    $region38: #{cnn_forward.1} parent=1 // pred_check
      _
    $region39: #{cnn_forward.1} parent=1 // pred_check_branch
      %45 = sbr.rel (0) target = $region41
    $region40: #{cnn_forward.1} parent=1 // pred_region
      %46 = dma.done [#allocation5], 20480
    $region41: #{cnn_forward.1} parent=1 // pred_fallthru
      _
    %v47 = vld [vmem:[%s0] sm:$0xff]
    %v48 = vld [vmem:[%s0 + $0x8] sm:$0xff]
    %v49 = vld [vmem:[%s0 + $0x10] sm:$0xff]
    %v50 = vld [vmem:[%s0 + $0x18] sm:$0xff]
    %v51 = vld [vmem:[%s0 + $0x20] sm:$0xff]
    %v52 = vld [vmem:[%s0 + $0x28] sm:$0xff]
    %v53 = vld [vmem:[%s0 + $0x30] sm:$0xff]
    %v54 = vld [vmem:[%s0 + $0x38] sm:$0xff]
    %v55 = vld [vmem:[%s0 + $0x40] sm:$0xff]
    %v56 = vld [vmem:[%s0 + $0x48] sm:$0xff]
    %v57 = vld [vmem:[%s0 + $0x50] sm:$0xff]
    %v58 = vld [vmem:[%s0 + $0x58] sm:$0xff]
    %v59 = vld [vmem:[%s0 + $0x60] sm:$0xff]
    %v60 = vld [vmem:[%s0 + $0x68] sm:$0xff]
    %v61 = vld [vmem:[%s0 + $0x70] sm:$0xff]
    %v62 = vld [vmem:[%s0 + $0x78] sm:$0xff]
    %v63 = vld [vmem:[%s1] sm:$0xff]
    %v64 = vld [vmem:[%s1 + $0x8] sm:$0xff]
    %v65 = vld [vmem:[%s1 + $0x10] sm:$0xff]
    %v66 = vld [vmem:[%s1 + $0x18] sm:$0xff]
    %v67 = vld [vmem:[%s1 + $0x20] sm:$0xff]
    %v68 = vld [vmem:[%s1 + $0x28] sm:$0xff]
    %v69 = vld [vmem:[%s1 + $0x30] sm:$0xff]
    %v70 = vld [vmem:[%s1 + $0x38] sm:$0xff]
    %v71 = vld [vmem:[%s1 + $0x40] sm:$0xff]
    %v72 = vld [vmem:[%s1 + $0x48] sm:$0xff]
    %v73 = vld [vmem:[%s1 + $0x50] sm:$0xff]
    %v74 = vld [vmem:[%s1 + $0x58] sm:$0xff]
    %v75 = vld [vmem:[%s1 + $0x60] sm:$0xff]
    %v76 = vld [vmem:[%s1 + $0x68] sm:$0xff]
    %v77 = vld [vmem:[%s1 + $0x70] sm:$0xff]
    %v78 = vld [vmem:[%s1 + $0x78] sm:$0xff]
    %v79 = vld [vmem:[%s1 + $0x80] sm:$0xff]
    %v80 = vld [vmem:[%s1 + $0x88] sm:$0xff]
    %v81 = vld [vmem:[%s1 + $0x90] sm:$0xff]
    %v82 = vld [vmem:[%s1 + $0x98] sm:$0xff]
    %v83 = vld [vmem:[%s1 + $0xa0] sm:$0xff]
    %v84 = vld [vmem:[%s1 + $0xa8] sm:$0xff]
    %v85 = vld [vmem:[%s1 + $0xb0] sm:$0xff]
    %v86 = vld [vmem:[%s1 + $0xb8] sm:$0xff]
    %v87 = vld [vmem:[%s1 + $0xc0] sm:$0xff]
    %v88 = vld [vmem:[%s1 + $0xc8] sm:$0xff]
    %v89 = vld [vmem:[%s1 + $0xd0] sm:$0xff]
    %v90 = vld [vmem:[%s1 + $0xd8] sm:$0xff]
    %v91 = vld [vmem:[%s1 + $0xe0] sm:$0xff]
    %v92 = vld [vmem:[%s1 + $0xe8] sm:$0xff]
    %v93 = vld [vmem:[%s1 + $0xf0] sm:$0xff]
    %v94 = vld [vmem:[%s1 + $0xf8] sm:$0xff]
    %v95 = vld [vmem:[%s1 + $0x100] sm:$0xff]
    %v96 = vld [vmem:[%s1 + $0x108] sm:$0xff]
    %v97 = vld [vmem:[%s1 + $0x110] sm:$0xff]
    %v98 = vld [vmem:[%s1 + $0x118] sm:$0xff]
    %v99 = vld [vmem:[%s1 + $0x120] sm:$0xff]
    %v100 = vld [vmem:[%s1 + $0x128] sm:$0xff]
    %v101 = vld [vmem:[%s1 + $0x130] sm:$0xff]
    %v102 = vld [vmem:[%s1 + $0x138] sm:$0xff]
    %v103 = vld [vmem:[%s1 + $0x140] sm:$0xff]
    %v104 = vld [vmem:[%s1 + $0x148] sm:$0xff]
    %v105 = vld [vmem:[%s1 + $0x150] sm:$0xff]
    %v106 = vld [vmem:[%s1 + $0x158] sm:$0xff]
    %v107 = vld [vmem:[%s1 + $0x160] sm:$0xff]
    %v108 = vld [vmem:[%s1 + $0x168] sm:$0xff]
    %v109 = vld [vmem:[%s1 + $0x170] sm:$0xff]
    %v110 = vld [vmem:[%s1 + $0x178] sm:$0xff]
    %v111 = vld [vmem:[%s1 + $0x180] sm:$0xff]
    %v112 = vld [vmem:[%s1 + $0x188] sm:$0xff]
    %v113 = vld [vmem:[%s1 + $0x190] sm:$0xff]
    %v114 = vld [vmem:[%s1 + $0x198] sm:$0xff]
    %v115 = vld [vmem:[%s1 + $0x1a0] sm:$0xff]
    %v116 = vld [vmem:[%s1 + $0x1a8] sm:$0xff]
    %v117 = vld [vmem:[%s1 + $0x1b0] sm:$0xff]
    %v118 = vld [vmem:[%s1 + $0x1b8] sm:$0xff]
    %v119 = vld [vmem:[%s1 + $0x1c0] sm:$0xff]
    %v120 = vld [vmem:[%s1 + $0x1c8] sm:$0xff]
    %v121 = vld [vmem:[%s1 + $0x1d0] sm:$0xff]
    %v122 = vld [vmem:[%s1 + $0x1d8] sm:$0xff]
    %v123 = vld [vmem:[%s1 + $0x1e0] sm:$0xff]
    %v124 = vld [vmem:[%s1 + $0x1e8] sm:$0xff]
    %v125 = vld [vmem:[%s1 + $0x1f0] sm:$0xff]
    %v126 = vld [vmem:[%s1 + $0x1f8] sm:$0xff]
    %v127 = vld [vmem:[%s1 + $0x200] sm:$0xff]
    %v128 = vld [vmem:[%s1 + $0x208] sm:$0xff]
    %v129 = vld [vmem:[%s1 + $0x210] sm:$0xff]
    %v130 = vld [vmem:[%s1 + $0x218] sm:$0xff]
    %v131 = vld [vmem:[%s1 + $0x220] sm:$0xff]
    %v132 = vld [vmem:[%s1 + $0x228] sm:$0xff]
    %v133 = vld [vmem:[%s1 + $0x230] sm:$0xff]
    %v134 = vld [vmem:[%s1 + $0x238] sm:$0xff]
    %v135 = vld [vmem:[%s1 + $0x240] sm:$0xff]
    %v136 = vld [vmem:[%s1 + $0x248] sm:$0xff]
    %v137 = vld [vmem:[%s1 + $0x250] sm:$0xff]
    %v138 = vld [vmem:[%s1 + $0x258] sm:$0xff]
    %v139 = vld [vmem:[%s1 + $0x260] sm:$0xff]
    %v140 = vld [vmem:[%s1 + $0x268] sm:$0xff]
    %v141 = vld [vmem:[%s1 + $0x270] sm:$0xff]
    %v142 = vld [vmem:[%s1 + $0x278] sm:$0xff]
    %v143 = vld [vmem:[%s1 + $0x280] sm:$0xff]
    %v144 = vld [vmem:[%s1 + $0x288] sm:$0xff]
    %v145 = vld [vmem:[%s1 + $0x290] sm:$0xff]
    %v146 = vld [vmem:[%s1 + $0x298] sm:$0xff]
    %v147 = vld [vmem:[%s1 + $0x2a0] sm:$0xff]
    %v148 = vld [vmem:[%s1 + $0x2a8] sm:$0xff]
    %v149 = vld [vmem:[%s1 + $0x2b0] sm:$0xff]
    %v150 = vld [vmem:[%s1 + $0x2b8] sm:$0xff]
    %v151 = vld [vmem:[%s1 + $0x2c0] sm:$0xff]
    %v152 = vld [vmem:[%s1 + $0x2c8] sm:$0xff]
    %v153 = vld [vmem:[%s1 + $0x2d0] sm:$0xff]
    %v154 = vld [vmem:[%s1 + $0x2d8] sm:$0xff]
    %v155 = vld [vmem:[%s1 + $0x2e0] sm:$0xff]
    %v156 = vld [vmem:[%s1 + $0x2e8] sm:$0xff]
    %v157 = vld [vmem:[%s1 + $0x2f0] sm:$0xff]
    %v158 = vld [vmem:[%s1 + $0x2f8] sm:$0xff]
    %v159 = vld [vmem:[%s1 + $0x300] sm:$0xff]
    %v160 = vld [vmem:[%s1 + $0x308] sm:$0xff]
    %v161 = vld [vmem:[%s1 + $0x310] sm:$0xff]
    %v162 = vld [vmem:[%s1 + $0x318] sm:$0xff]
    %v163 = vld [vmem:[%s1 + $0x320] sm:$0xff]
    %v164 = vld [vmem:[%s1 + $0x328] sm:$0xff]
    %v165 = vld [vmem:[%s1 + $0x330] sm:$0xff]
    %v166 = vld [vmem:[%s1 + $0x338] sm:$0xff]
    %v167 = vld [vmem:[%s1 + $0x340] sm:$0xff]
    %v168 = vld [vmem:[%s1 + $0x348] sm:$0xff]
    %v169 = vld [vmem:[%s1 + $0x350] sm:$0xff]
    %v170 = vld [vmem:[%s1 + $0x358] sm:$0xff]
    %v171 = vld [vmem:[%s1 + $0x360] sm:$0xff]
    %v172 = vld [vmem:[%s1 + $0x368] sm:$0xff]
    %v173 = vld [vmem:[%s1 + $0x370] sm:$0xff]
    %v174 = vld [vmem:[%s1 + $0x378] sm:$0xff]
    %v175 = vld [vmem:[%s1 + $0x380] sm:$0xff]
    %v176 = vld [vmem:[%s1 + $0x388] sm:$0xff]
    %v177 = vld [vmem:[%s1 + $0x390] sm:$0xff]
    %v178 = vld [vmem:[%s1 + $0x398] sm:$0xff]
    %v179 = vld [vmem:[%s1 + $0x3a0] sm:$0xff]
    %v180 = vld [vmem:[%s1 + $0x3a8] sm:$0xff]
    %v181 = vld [vmem:[%s1 + $0x3b0] sm:$0xff]
    %v182 = vld [vmem:[%s1 + $0x3b8] sm:$0xff]
    %v183 = vld [vmem:[%s1 + $0x3c0] sm:$0xff]
    %v184 = vld [vmem:[%s1 + $0x3c8] sm:$0xff]
    %v185 = vld [vmem:[%s1 + $0x3d0] sm:$0xff]
    %v186 = vld [vmem:[%s1 + $0x3d8] sm:$0xff]
    %v187 = vld [vmem:[%s1 + $0x3e0] sm:$0xff]
    %v188 = vld [vmem:[%s1 + $0x3e8] sm:$0xff]
    %v189 = vld [vmem:[%s1 + $0x3f0] sm:$0xff]
    %v190 = vld [vmem:[%s1 + $0x3f8] sm:$0xff]
    %v191 = vld [vmem:[%s1 + $0x400] sm:$0xff]
    %v192 = vld [vmem:[%s1 + $0x408] sm:$0xff]
    %v193 = vld [vmem:[%s1 + $0x410] sm:$0xff]
    %v194 = vld [vmem:[%s1 + $0x418] sm:$0xff]
    %v195 = vld [vmem:[%s1 + $0x420] sm:$0xff]
    %v196 = vld [vmem:[%s1 + $0x428] sm:$0xff]
    %v197 = vld [vmem:[%s1 + $0x430] sm:$0xff]
    %v198 = vld [vmem:[%s1 + $0x438] sm:$0xff]
    %v199 = vld [vmem:[%s1 + $0x440] sm:$0xff]
    %v200 = vld [vmem:[%s1 + $0x448] sm:$0xff]
    %v201 = vld [vmem:[%s1 + $0x450] sm:$0xff]
    %v202 = vld [vmem:[%s1 + $0x458] sm:$0xff]
    %v203 = vld [vmem:[%s1 + $0x460] sm:$0xff]
    %v204 = vld [vmem:[%s1 + $0x468] sm:$0xff]
    %v205 = vld [vmem:[%s1 + $0x470] sm:$0xff]
    %v206 = vld [vmem:[%s1 + $0x478] sm:$0xff]
    %v207 = vld [vmem:[%s1 + $0x480] sm:$0xff]
    %v208 = vld [vmem:[%s1 + $0x488] sm:$0xff]
    %v209 = vld [vmem:[%s1 + $0x490] sm:$0xff]
    %v210 = vld [vmem:[%s1 + $0x498] sm:$0xff]
    %v211 = vld [vmem:[%s1 + $0x4a0] sm:$0xff]
    %v212 = vld [vmem:[%s1 + $0x4a8] sm:$0xff]
    %v213 = vld [vmem:[%s1 + $0x4b0] sm:$0xff]
    %v214 = vld [vmem:[%s1 + $0x4b8] sm:$0xff]
    %v215 = vld [vmem:[%s1 + $0x4c0] sm:$0xff]
    %v216 = vld [vmem:[%s1 + $0x4c8] sm:$0xff]
    %v217 = vld [vmem:[%s1 + $0x4d0] sm:$0xff]
    %v218 = vld [vmem:[%s1 + $0x4d8] sm:$0xff]
    %v219 = vld [vmem:[%s1 + $0x4e0] sm:$0xff]
    %v220 = vld [vmem:[%s1 + $0x4e8] sm:$0xff]
    %v221 = vld [vmem:[%s1 + $0x4f0] sm:$0xff]
    %v222 = vld [vmem:[%s1 + $0x4f8] sm:$0xff]
    %v223 = vld [vmem:[%s1 + $0x500] sm:$0xff]
    %v224 = vld [vmem:[%s1 + $0x508] sm:$0xff]
    %v225 = vld [vmem:[%s1 + $0x510] sm:$0xff]
    %v226 = vld [vmem:[%s1 + $0x518] sm:$0xff]
    %v227 = vld [vmem:[%s1 + $0x520] sm:$0xff]
    %v228 = vld [vmem:[%s1 + $0x528] sm:$0xff]
    %v229 = vld [vmem:[%s1 + $0x530] sm:$0xff]
    %v230 = vld [vmem:[%s1 + $0x538] sm:$0xff]
    %v231 = vld [vmem:[%s1 + $0x540] sm:$0xff]
    %v232 = vld [vmem:[%s1 + $0x548] sm:$0xff]
    %v233 = vld [vmem:[%s1 + $0x550] sm:$0xff]
    %v234 = vld [vmem:[%s1 + $0x558] sm:$0xff]
    %v235 = vld [vmem:[%s1 + $0x560] sm:$0xff]
    %v236 = vld [vmem:[%s1 + $0x568] sm:$0xff]
    %v237 = vld [vmem:[%s1 + $0x570] sm:$0xff]
    %v238 = vld [vmem:[%s1 + $0x578] sm:$0xff]
    %v239 = vld [vmem:[%s1 + $0x580] sm:$0xff]
    %v240 = vld [vmem:[%s1 + $0x588] sm:$0xff]
    %v241 = vld [vmem:[%s1 + $0x590] sm:$0xff]
    %v242 = vld [vmem:[%s1 + $0x598] sm:$0xff]
    %v243 = vld [vmem:[%s1 + $0x5a0] sm:$0xff]
    %v244 = vld [vmem:[%s1 + $0x5a8] sm:$0xff]
    %v245 = vld [vmem:[%s1 + $0x5b0] sm:$0xff]
    %v246 = vld [vmem:[%s1 + $0x5b8] sm:$0xff]
    %v247 = vld [vmem:[%s1 + $0x5c0] sm:$0xff]
    %v248 = vld [vmem:[%s1 + $0x5c8] sm:$0xff]
    %v249 = vld [vmem:[%s1 + $0x5d0] sm:$0xff]
    %v250 = vld [vmem:[%s1 + $0x5d8] sm:$0xff]
    %v251 = vld [vmem:[%s1 + $0x5e0] sm:$0xff]
    %v252 = vld [vmem:[%s1 + $0x5e8] sm:$0xff]
    %v253 = vld [vmem:[%s1 + $0x5f0] sm:$0xff]
    %v254 = vld [vmem:[%s1 + $0x5f8] sm:$0xff]
    %v255 = vld [vmem:[%s1 + $0x600] sm:$0xff]
    %v256 = vld [vmem:[%s1 + $0x608] sm:$0xff]
    %v257 = vld [vmem:[%s1 + $0x610] sm:$0xff]
    %v258 = vld [vmem:[%s1 + $0x618] sm:$0xff]
    %v259 = vld [vmem:[%s1 + $0x620] sm:$0xff]
    %v260 = vld [vmem:[%s1 + $0x628] sm:$0xff]
    %v261 = vld [vmem:[%s1 + $0x630] sm:$0xff]
    %v262 = vld [vmem:[%s1 + $0x638] sm:$0xff]
    %v263 = vld [vmem:[%s1 + $0x640] sm:$0xff]
    %v264 = vld [vmem:[%s1 + $0x648] sm:$0xff]
    %v265 = vld [vmem:[%s1 + $0x650] sm:$0xff]
    %v266 = vld [vmem:[%s1 + $0x658] sm:$0xff]
    %v267 = vld [vmem:[%s1 + $0x660] sm:$0xff]
    %v268 = vld [vmem:[%s1 + $0x668] sm:$0xff]
    %v269 = vld [vmem:[%s1 + $0x670] sm:$0xff]
    %v270 = vld [vmem:[%s1 + $0x678] sm:$0xff]
    %v271 = vld [vmem:[%s1 + $0x680] sm:$0xff]
    %v272 = vld [vmem:[%s1 + $0x688] sm:$0xff]
    %v273 = vld [vmem:[%s1 + $0x690] sm:$0xff]
    %v274 = vld [vmem:[%s1 + $0x698] sm:$0xff]
    %v275 = vld [vmem:[%s1 + $0x6a0] sm:$0xff]
    %v276 = vld [vmem:[%s1 + $0x6a8] sm:$0xff]
    %v277 = vld [vmem:[%s1 + $0x6b0] sm:$0xff]
    %v278 = vld [vmem:[%s1 + $0x6b8] sm:$0xff]
    %v279 = vld [vmem:[%s1 + $0x6c0] sm:$0xff]
    %v280 = vld [vmem:[%s1 + $0x6c8] sm:$0xff]
    %v281 = vld [vmem:[%s1 + $0x6d0] sm:$0xff]
    %v282 = vld [vmem:[%s1 + $0x6d8] sm:$0xff]
    %v283 = vld [vmem:[%s1 + $0x6e0] sm:$0xff]
    %v284 = vld [vmem:[%s1 + $0x6e8] sm:$0xff]
    %v285 = vld [vmem:[%s1 + $0x6f0] sm:$0xff]
    %v286 = vld [vmem:[%s1 + $0x6f8] sm:$0xff]
    %v287 = vld [vmem:[%s1 + $0x700] sm:$0xff]
    %v288 = vld [vmem:[%s1 + $0x708] sm:$0xff]
    %v289 = vld [vmem:[%s1 + $0x710] sm:$0xff]
    %v290 = vld [vmem:[%s1 + $0x718] sm:$0xff]
    %v291 = vld [vmem:[%s1 + $0x720] sm:$0xff]
    %v292 = vld [vmem:[%s1 + $0x728] sm:$0xff]
    %v293 = vld [vmem:[%s1 + $0x730] sm:$0xff]
    %v294 = vld [vmem:[%s1 + $0x738] sm:$0xff]
    %v295 = vld [vmem:[%s1 + $0x740] sm:$0xff]
    %v296 = vld [vmem:[%s1 + $0x748] sm:$0xff]
    %v297 = vld [vmem:[%s1 + $0x750] sm:$0xff]
    %v298 = vld [vmem:[%s1 + $0x758] sm:$0xff]
    %v299 = vld [vmem:[%s1 + $0x760] sm:$0xff]
    %v300 = vld [vmem:[%s1 + $0x768] sm:$0xff]
    %v301 = vld [vmem:[%s1 + $0x770] sm:$0xff]
    %v302 = vld [vmem:[%s1 + $0x778] sm:$0xff]
    %v303 = vld [vmem:[%s1 + $0x780] sm:$0xff]
    %v304 = vld [vmem:[%s1 + $0x788] sm:$0xff]
    %v305 = vld [vmem:[%s1 + $0x790] sm:$0xff]
    %v306 = vld [vmem:[%s1 + $0x798] sm:$0xff]
    %v307 = vld [vmem:[%s1 + $0x7a0] sm:$0xff]
    %v308 = vld [vmem:[%s1 + $0x7a8] sm:$0xff]
    %v309 = vld [vmem:[%s1 + $0x7b0] sm:$0xff]
    %v310 = vld [vmem:[%s1 + $0x7b8] sm:$0xff]
    %v311 = vld [vmem:[%s1 + $0x7c0] sm:$0xff]
    %v312 = vld [vmem:[%s1 + $0x7c8] sm:$0xff]
    %v313 = vld [vmem:[%s1 + $0x7d0] sm:$0xff]
    %v314 = vld [vmem:[%s1 + $0x7d8] sm:$0xff]
    %v315 = vld [vmem:[%s1 + $0x7e0] sm:$0xff]
    %v316 = vld [vmem:[%s1 + $0x7e8] sm:$0xff]
    %v317 = vld [vmem:[%s1 + $0x7f0] sm:$0xff]
    %v318 = vld [vmem:[%s1 + $0x7f8] sm:$0xff]
    %v319 = vld [vmem:[%s2] sm:$0xf]
    %v321 = vlaneseq
    %v322 = vshrl.u32 %v321, 7
    %v323 = vsub.s32 0, %v322
    %v324 = vrot.slane %v319, %v323
    %v325 = vlaneseq
    %v326 = vshrl.u32 %v325, 7
    %v327 = vsub.s32 1, %v326
    %v328 = vrot.slane %v319, %v327
    %v329 = vlaneseq
    %v330 = vshrl.u32 %v329, 7
    %v331 = vsub.s32 2, %v330
    %v332 = vrot.slane %v319, %v331
    %v333 = vlaneseq
    %v334 = vshrl.u32 %v333, 7
    %v335 = vsub.s32 3, %v334
    %v336 = vrot.slane %v319, %v335
    %341 = vmatprep.subr.mxu0 %v64
    %342 = vmatpush1.msra.mxu0 %v63
    %343 = vmatprep.subr.mxu0 %v68
    %344 = vmatpush1.msra.mxu0 %v67
    %345 = vmatprep.subr.mxu0 %v72
    %346 = vmatpush1.msra.mxu0 %v71
    %347 = vmatprep.subr.mxu0 %v76
    %348 = vmatpush1.msra.mxu0 %v75
    %349 = vmatprep.subr.mxu0 %v80
    %350 = vmatpush1.msra.mxu0 %v79
    %351 = vmatprep.subr.mxu0 %v84
    %352 = vmatpush1.msra.mxu0 %v83
    %353 = vmatprep.subr.mxu0 %v88
    %354 = vmatpush1.msra.mxu0 %v87
    %355 = vmatprep.subr.mxu0 %v92
    %356 = vmatpush1.msra.mxu0 %v91
    %357 = vmatprep.subr.mxu0 %v96
    %358 = vmatpush1.msra.mxu0 %v95
    %359 = vmatprep.subr.mxu0 %v100
    %360 = vmatpush1.msra.mxu0 %v99
    %361 = vmatprep.subr.mxu0 %v104
    %362 = vmatpush1.msra.mxu0 %v103
    %363 = vmatprep.subr.mxu0 %v108
    %364 = vmatpush1.msra.mxu0 %v107
    %365 = vmatprep.subr.mxu0 %v112
    %366 = vmatpush1.msra.mxu0 %v111
    %367 = vmatprep.subr.mxu0 %v116
    %368 = vmatpush1.msra.mxu0 %v115
    %369 = vmatprep.subr.mxu0 %v120
    %370 = vmatpush1.msra.mxu0 %v119
    %371 = vmatprep.subr.mxu0 %v124
    %372 = vmatpush1.msra.mxu0 %v123
    %373 = vmatprep.subr.mxu0 %v128
    %374 = vmatpush1.msra.mxu0 %v127
    %375 = vmatprep.subr.mxu0 %v132
    %376 = vmatpush1.msra.mxu0 %v131
    %377 = vmatprep.subr.mxu0 %v136
    %378 = vmatpush1.msra.mxu0 %v135
    %379 = vmatprep.subr.mxu0 %v140
    %380 = vmatpush1.msra.mxu0 %v139
    %381 = vmatprep.subr.mxu0 %v144
    %382 = vmatpush1.msra.mxu0 %v143
    %383 = vmatprep.subr.mxu0 %v148
    %384 = vmatpush1.msra.mxu0 %v147
    %385 = vmatprep.subr.mxu0 %v152
    %386 = vmatpush1.msra.mxu0 %v151
    %387 = vmatprep.subr.mxu0 %v156
    %388 = vmatpush1.msra.mxu0 %v155
    %389 = vmatprep.subr.mxu0 %v160
    %390 = vmatpush1.msra.mxu0 %v159
    %391 = vmatprep.subr.mxu0 %v164
    %392 = vmatpush1.msra.mxu0 %v163
    %393 = vmatprep.subr.mxu0 %v168
    %394 = vmatpush1.msra.mxu0 %v167
    %395 = vmatprep.subr.mxu0 %v172
    %396 = vmatpush1.msra.mxu0 %v171
    %397 = vmatprep.subr.mxu0 %v176
    %398 = vmatpush1.msra.mxu0 %v175
    %399 = vmatprep.subr.mxu0 %v180
    %400 = vmatpush1.msra.mxu0 %v179
    %401 = vmatprep.subr.mxu0 %v184
    %402 = vmatpush1.msra.mxu0 %v183
    %403 = vmatprep.subr.mxu0 %v188
    %404 = vmatpush1.msra.mxu0 %v187
    %405 = vmatprep.mubr.f32.mxu0 %v48
    %406 = vmatmul.mubr.f32.gmra.mrb[0].mxu0 %v47
    %v407 = vpop.f32.mrb[0].mxu0
    %v408 = vadd.f32 %v324, %v407
    %v409 = vpop.f32.mrb[0].mxu0
    %v410 = vadd.f32 %v328, %v409
    %411 = vmatprep.mubr.f32.mxu0 %v52
    %412 = vmatmul.mubr.f32.gmra.mrb[0].mxu0 %v51
    %v413 = vpop.f32.mrb[0].mxu0
    %v414 = vadd.f32 %v324, %v413
    %v415 = vpop.f32.mrb[0].mxu0
    %v416 = vadd.f32 %v328, %v415
    %417 = vmatprep.mubr.f32.mxu0 %v56
    %418 = vmatmul.mubr.f32.gmra.mrb[0].mxu0 %v55
    %v419 = vpop.f32.mrb[0].mxu0
    %v420 = vadd.f32 %v324, %v419
    %v421 = vpop.f32.mrb[0].mxu0
    %v422 = vadd.f32 %v328, %v421
    %423 = vmatprep.mubr.f32.mxu0 %v60
    %424 = vmatmul.mubr.f32.gmra.mrb[0].mxu0 %v59
    %v425 = vpop.f32.mrb[0].mxu0
    %v426 = vadd.f32 %v324, %v425
    %v427 = vpop.f32.mrb[0].mxu0
    %v428 = vadd.f32 %v328, %v427
    %429 = vdwg.mxu0
    %430 = vmatprep.subr.mxu0 %v192
    %431 = vmatpush1.msra.mxu0 %v191
    %432 = vmatprep.subr.mxu0 %v196
    %433 = vmatpush1.msra.mxu0 %v195
    %434 = vmatprep.subr.mxu0 %v200
    %435 = vmatpush1.msra.mxu0 %v199
    %436 = vmatprep.subr.mxu0 %v204
    %437 = vmatpush1.msra.mxu0 %v203
    %438 = vmatprep.subr.mxu0 %v208
    %439 = vmatpush1.msra.mxu0 %v207
    %440 = vmatprep.subr.mxu0 %v212
    %441 = vmatpush1.msra.mxu0 %v211
    %442 = vmatprep.subr.mxu0 %v216
    %443 = vmatpush1.msra.mxu0 %v215
    %444 = vmatprep.subr.mxu0 %v220
    %445 = vmatpush1.msra.mxu0 %v219
    %446 = vmatprep.subr.mxu0 %v224
    %447 = vmatpush1.msra.mxu0 %v223
    %448 = vmatprep.subr.mxu0 %v228
    %449 = vmatpush1.msra.mxu0 %v227
    %450 = vmatprep.subr.mxu0 %v232
    %451 = vmatpush1.msra.mxu0 %v231
    %452 = vmatprep.subr.mxu0 %v236
    %453 = vmatpush1.msra.mxu0 %v235
    %454 = vmatprep.subr.mxu0 %v240
    %455 = vmatpush1.msra.mxu0 %v239
    %456 = vmatprep.subr.mxu0 %v244
    %457 = vmatpush1.msra.mxu0 %v243
    %458 = vmatprep.subr.mxu0 %v248
    %459 = vmatpush1.msra.mxu0 %v247
    %460 = vmatprep.subr.mxu0 %v252
    %461 = vmatpush1.msra.mxu0 %v251
    %462 = vmatprep.subr.mxu0 %v256
    %463 = vmatpush1.msra.mxu0 %v255
    %464 = vmatprep.subr.mxu0 %v260
    %465 = vmatpush1.msra.mxu0 %v259
    %466 = vmatprep.subr.mxu0 %v264
    %467 = vmatpush1.msra.mxu0 %v263
    %468 = vmatprep.subr.mxu0 %v268
    %469 = vmatpush1.msra.mxu0 %v267
    %470 = vmatprep.subr.mxu0 %v272
    %471 = vmatpush1.msra.mxu0 %v271
    %472 = vmatprep.subr.mxu0 %v276
    %473 = vmatpush1.msra.mxu0 %v275
    %474 = vmatprep.subr.mxu0 %v280
    %475 = vmatpush1.msra.mxu0 %v279
    %476 = vmatprep.subr.mxu0 %v284
    %477 = vmatpush1.msra.mxu0 %v283
    %478 = vmatprep.subr.mxu0 %v288
    %479 = vmatpush1.msra.mxu0 %v287
    %480 = vmatprep.subr.mxu0 %v292
    %481 = vmatpush1.msra.mxu0 %v291
    %482 = vmatprep.subr.mxu0 %v296
    %483 = vmatpush1.msra.mxu0 %v295
    %484 = vmatprep.subr.mxu0 %v300
    %485 = vmatpush1.msra.mxu0 %v299
    %486 = vmatprep.subr.mxu0 %v304
    %487 = vmatpush1.msra.mxu0 %v303
    %488 = vmatprep.subr.mxu0 %v308
    %489 = vmatpush1.msra.mxu0 %v307
    %490 = vmatprep.subr.mxu0 %v312
    %491 = vmatpush1.msra.mxu0 %v311
    %492 = vmatprep.subr.mxu0 %v316
    %493 = vmatpush1.msra.mxu0 %v315
    %494 = vmatprep.mubr.f32.mxu0 %v50
    %495 = vmatmul.mubr.f32.gmra.mrb[0].mxu0 %v49
    %v496 = vpop.f32.mrb[0].mxu0
    %v497 = vadd.f32 %v408, %v496
    %v498 = vpop.f32.mrb[0].mxu0
    %v499 = vadd.f32 %v410, %v498
    %500 = vmatprep.mubr.f32.mxu0 %v54
    %501 = vmatmul.mubr.f32.gmra.mrb[0].mxu0 %v53
    %v502 = vpop.f32.mrb[0].mxu0
    %v503 = vadd.f32 %v414, %v502
    %v504 = vpop.f32.mrb[0].mxu0
    %v505 = vadd.f32 %v416, %v504
    %506 = vmatprep.mubr.f32.mxu0 %v58
    %507 = vmatmul.mubr.f32.gmra.mrb[0].mxu0 %v57
    %v508 = vpop.f32.mrb[0].mxu0
    %v509 = vadd.f32 %v420, %v508
    %v510 = vpop.f32.mrb[0].mxu0
    %v511 = vadd.f32 %v422, %v510
    %512 = vmatprep.mubr.f32.mxu0 %v62
    %513 = vmatmul.mubr.f32.gmra.mrb[0].mxu0 %v61
    %v514 = vpop.f32.mrb[0].mxu0
    %v515 = vadd.f32 %v426, %v514
    %v516 = vpop.f32.mrb[0].mxu0
    %v517 = vadd.f32 %v428, %v516
    %518 = vdwg.mxu0
    %519 = vmatprep.subr.mxu0 %v66
    %520 = vmatpush1.msra.mxu0 %v65
    %521 = vmatprep.subr.mxu0 %v70
    %522 = vmatpush1.msra.mxu0 %v69
    %523 = vmatprep.subr.mxu0 %v74
    %524 = vmatpush1.msra.mxu0 %v73
    %525 = vmatprep.subr.mxu0 %v78
    %526 = vmatpush1.msra.mxu0 %v77
    %527 = vmatprep.subr.mxu0 %v82
    %528 = vmatpush1.msra.mxu0 %v81
    %529 = vmatprep.subr.mxu0 %v86
    %530 = vmatpush1.msra.mxu0 %v85
    %531 = vmatprep.subr.mxu0 %v90
    %532 = vmatpush1.msra.mxu0 %v89
    %533 = vmatprep.subr.mxu0 %v94
    %534 = vmatpush1.msra.mxu0 %v93
    %535 = vmatprep.subr.mxu0 %v98
    %536 = vmatpush1.msra.mxu0 %v97
    %537 = vmatprep.subr.mxu0 %v102
    %538 = vmatpush1.msra.mxu0 %v101
    %539 = vmatprep.subr.mxu0 %v106
    %540 = vmatpush1.msra.mxu0 %v105
    %541 = vmatprep.subr.mxu0 %v110
    %542 = vmatpush1.msra.mxu0 %v109
    %543 = vmatprep.subr.mxu0 %v114
    %544 = vmatpush1.msra.mxu0 %v113
    %545 = vmatprep.subr.mxu0 %v118
    %546 = vmatpush1.msra.mxu0 %v117
    %547 = vmatprep.subr.mxu0 %v122
    %548 = vmatpush1.msra.mxu0 %v121
    %549 = vmatprep.subr.mxu0 %v126
    %550 = vmatpush1.msra.mxu0 %v125
    %551 = vmatprep.subr.mxu0 %v130
    %552 = vmatpush1.msra.mxu0 %v129
    %553 = vmatprep.subr.mxu0 %v134
    %554 = vmatpush1.msra.mxu0 %v133
    %555 = vmatprep.subr.mxu0 %v138
    %556 = vmatpush1.msra.mxu0 %v137
    %557 = vmatprep.subr.mxu0 %v142
    %558 = vmatpush1.msra.mxu0 %v141
    %559 = vmatprep.subr.mxu0 %v146
    %560 = vmatpush1.msra.mxu0 %v145
    %561 = vmatprep.subr.mxu0 %v150
    %562 = vmatpush1.msra.mxu0 %v149
    %563 = vmatprep.subr.mxu0 %v154
    %564 = vmatpush1.msra.mxu0 %v153
    %565 = vmatprep.subr.mxu0 %v158
    %566 = vmatpush1.msra.mxu0 %v157
    %567 = vmatprep.subr.mxu0 %v162
    %568 = vmatpush1.msra.mxu0 %v161
    %569 = vmatprep.subr.mxu0 %v166
    %570 = vmatpush1.msra.mxu0 %v165
    %571 = vmatprep.subr.mxu0 %v170
    %572 = vmatpush1.msra.mxu0 %v169
    %573 = vmatprep.subr.mxu0 %v174
    %574 = vmatpush1.msra.mxu0 %v173
    %575 = vmatprep.subr.mxu0 %v178
    %576 = vmatpush1.msra.mxu0 %v177
    %577 = vmatprep.subr.mxu0 %v182
    %578 = vmatpush1.msra.mxu0 %v181
    %579 = vmatprep.subr.mxu0 %v186
    %580 = vmatpush1.msra.mxu0 %v185
    %581 = vmatprep.subr.mxu0 %v190
    %582 = vmatpush1.msra.mxu0 %v189
    %583 = vmatprep.mubr.f32.mxu0 %v48
    %584 = vmatmul.mubr.f32.gmra.mrb[0].mxu0 %v47
    %v585 = vpop.f32.mrb[0].mxu0
    %v586 = vadd.f32 %v332, %v585
    %v587 = vpop.f32.mrb[0].mxu0
    %v588 = vadd.f32 %v336, %v587
    %589 = vmatprep.mubr.f32.mxu0 %v52
    %590 = vmatmul.mubr.f32.gmra.mrb[0].mxu0 %v51
    %v591 = vpop.f32.mrb[0].mxu0
    %v592 = vadd.f32 %v332, %v591
    %v593 = vpop.f32.mrb[0].mxu0
    %v594 = vadd.f32 %v336, %v593
    %595 = vmatprep.mubr.f32.mxu0 %v56
    %596 = vmatmul.mubr.f32.gmra.mrb[0].mxu0 %v55
    %v597 = vpop.f32.mrb[0].mxu0
    %v598 = vadd.f32 %v332, %v597
    %v599 = vpop.f32.mrb[0].mxu0
    %v600 = vadd.f32 %v336, %v599
    %601 = vmatprep.mubr.f32.mxu0 %v60
    %602 = vmatmul.mubr.f32.gmra.mrb[0].mxu0 %v59
    %v603 = vpop.f32.mrb[0].mxu0
    %v604 = vadd.f32 %v332, %v603
    %v605 = vpop.f32.mrb[0].mxu0
    %v606 = vadd.f32 %v336, %v605
    %607 = vdwg.mxu0
    %608 = vmatprep.subr.mxu0 %v194
    %609 = vmatpush1.msra.mxu0 %v193
    %610 = vmatprep.subr.mxu0 %v198
    %611 = vmatpush1.msra.mxu0 %v197
    %612 = vmatprep.subr.mxu0 %v202
    %613 = vmatpush1.msra.mxu0 %v201
    %614 = vmatprep.subr.mxu0 %v206
    %615 = vmatpush1.msra.mxu0 %v205
    %616 = vmatprep.subr.mxu0 %v210
    %617 = vmatpush1.msra.mxu0 %v209
    %618 = vmatprep.subr.mxu0 %v214
    %619 = vmatpush1.msra.mxu0 %v213
    %620 = vmatprep.subr.mxu0 %v218
    %621 = vmatpush1.msra.mxu0 %v217
    %622 = vmatprep.subr.mxu0 %v222
    %623 = vmatpush1.msra.mxu0 %v221
    %624 = vmatprep.subr.mxu0 %v226
    %625 = vmatpush1.msra.mxu0 %v225
    %626 = vmatprep.subr.mxu0 %v230
    %627 = vmatpush1.msra.mxu0 %v229
    %628 = vmatprep.subr.mxu0 %v234
    %629 = vmatpush1.msra.mxu0 %v233
    %630 = vmatprep.subr.mxu0 %v238
    %631 = vmatpush1.msra.mxu0 %v237
    %632 = vmatprep.subr.mxu0 %v242
    %633 = vmatpush1.msra.mxu0 %v241
    %634 = vmatprep.subr.mxu0 %v246
    %635 = vmatpush1.msra.mxu0 %v245
    %636 = vmatprep.subr.mxu0 %v250
    %637 = vmatpush1.msra.mxu0 %v249
    %638 = vmatprep.subr.mxu0 %v254
    %639 = vmatpush1.msra.mxu0 %v253
    %640 = vmatprep.subr.mxu0 %v258
    %641 = vmatpush1.msra.mxu0 %v257
    %642 = vmatprep.subr.mxu0 %v262
    %643 = vmatpush1.msra.mxu0 %v261
    %644 = vmatprep.subr.mxu0 %v266
    %645 = vmatpush1.msra.mxu0 %v265
    %646 = vmatprep.subr.mxu0 %v270
    %647 = vmatpush1.msra.mxu0 %v269
    %648 = vmatprep.subr.mxu0 %v274
    %649 = vmatpush1.msra.mxu0 %v273
    %650 = vmatprep.subr.mxu0 %v278
    %651 = vmatpush1.msra.mxu0 %v277
    %652 = vmatprep.subr.mxu0 %v282
    %653 = vmatpush1.msra.mxu0 %v281
    %654 = vmatprep.subr.mxu0 %v286
    %655 = vmatpush1.msra.mxu0 %v285
    %656 = vmatprep.subr.mxu0 %v290
    %657 = vmatpush1.msra.mxu0 %v289
    %658 = vmatprep.subr.mxu0 %v294
    %659 = vmatpush1.msra.mxu0 %v293
    %660 = vmatprep.subr.mxu0 %v298
    %661 = vmatpush1.msra.mxu0 %v297
    %662 = vmatprep.subr.mxu0 %v302
    %663 = vmatpush1.msra.mxu0 %v301
    %664 = vmatprep.subr.mxu0 %v306
    %665 = vmatpush1.msra.mxu0 %v305
    %666 = vmatprep.subr.mxu0 %v310
    %667 = vmatpush1.msra.mxu0 %v309
    %668 = vmatprep.subr.mxu0 %v314
    %669 = vmatpush1.msra.mxu0 %v313
    %670 = vmatprep.subr.mxu0 %v318
    %671 = vmatpush1.msra.mxu0 %v317
    %672 = vmatprep.mubr.f32.mxu0 %v50
    %673 = vmatmul.mubr.f32.gmra.mrb[0].mxu0 %v49
    %v674 = vpop.f32.mrb[0].mxu0
    %v675 = vadd.f32 %v586, %v674
    %v676 = vpop.f32.mrb[0].mxu0
    %v677 = vadd.f32 %v588, %v676
    %678 = vmatprep.mubr.f32.mxu0 %v54
    %679 = vmatmul.mubr.f32.gmra.mrb[0].mxu0 %v53
    %v680 = vpop.f32.mrb[0].mxu0
    %v681 = vadd.f32 %v592, %v680
    %v682 = vpop.f32.mrb[0].mxu0
    %v683 = vadd.f32 %v594, %v682
    %684 = vmatprep.mubr.f32.mxu0 %v58
    %685 = vmatmul.mubr.f32.gmra.mrb[0].mxu0 %v57
    %v686 = vpop.f32.mrb[0].mxu0
    %v687 = vadd.f32 %v598, %v686
    %v688 = vpop.f32.mrb[0].mxu0
    %v689 = vadd.f32 %v600, %v688
    %690 = vmatprep.mubr.f32.mxu0 %v62
    %691 = vmatmul.mubr.f32.gmra.mrb[0].mxu0 %v61
    %v692 = vpop.f32.mrb[0].mxu0
    %v693 = vadd.f32 %v604, %v692
    %v694 = vpop.f32.mrb[0].mxu0
    %v695 = vadd.f32 %v606, %v694
    %696 = vdwg.mxu0
    %v697 = vmax.f32 %v497, 0.0
    %v698 = vmax.f32 %v499, 0.0
    %v699 = vmax.f32 %v675, 0.0
    %v700 = vmax.f32 %v677, 0.0
    %v701 = vmax.f32 %v503, 0.0
    %v702 = vmax.f32 %v505, 0.0
    %v703 = vmax.f32 %v681, 0.0
    %v704 = vmax.f32 %v683, 0.0
    %v705 = vmax.f32 %v509, 0.0
    %v706 = vmax.f32 %v511, 0.0
    %v707 = vmax.f32 %v687, 0.0
    %v708 = vmax.f32 %v689, 0.0
    %v709 = vmax.f32 %v515, 0.0
    %v710 = vmax.f32 %v517, 0.0
    %v711 = vmax.f32 %v693, 0.0
    %v712 = vmax.f32 %v695, 0.0
    %v713 = vmax.f32 %v697, %v701
    %v714 = vmax.f32 %v698, %v702
    %v715 = vmax.f32 %v699, %v703
    %v716 = vmax.f32 %v700, %v704
    %v717 = vmax.f32 %v705, %v709
    %v718 = vmax.f32 %v706, %v710
    %v719 = vmax.f32 %v707, %v711
    %v720 = vmax.f32 %v708, %v712
    %v721 = vmax.f32 %v713, %v715
    %v722 = vmax.f32 %v714, %v716
    %v723 = vmax.f32 %v717, %v719
    %v724 = vmax.f32 %v718, %v720
    %725 = vst [vmem:[#allocation2] sm:$0xff] %v721
    %726 = vst [vmem:[#allocation2 + $0x8] sm:$0xff] %v722
    %727 = vst [vmem:[#allocation2 + $0x20] sm:$0xff] %v723
    %728 = vst [vmem:[#allocation2 + $0x28] sm:$0xff] %v724
    %729 = vst [vmem:[#allocation2 + $0x10] sm:$0xff] 0.0
    %730 = vst [vmem:[#allocation2 + $0x18] sm:$0xff] 0.0
    %731 = vst [vmem:[#allocation2 + $0x30] sm:$0xff] 0.0
    %732 = vst [vmem:[#allocation2 + $0x38] sm:$0xff] 0.0
    %v733 = vld [vmem:[#allocation2] sm:$0xff]
    %v734 = vld [vmem:[#allocation2 + $0x8] sm:$0xff]
    %v735 = vld [vmem:[#allocation2 + $0x20] sm:$0xff]
    %v736 = vld [vmem:[#allocation2 + $0x28] sm:$0xff]
    %v737 = vld [vmem:[#allocation2] sm:$0xfe]
    %v738 = vld [vmem:[#allocation2 + $0x8] sm:$0xfe]
    %v739 = vld [vmem:[#allocation2 + $0x10] sm:$0x1]
    %v740 = vld [vmem:[#allocation2 + $0x18] sm:$0x1]
    %v741 = vld [vmem:[#allocation2 + $0x20] sm:$0xfe]
    %v742 = vld [vmem:[#allocation2 + $0x28] sm:$0xfe]
    %v743 = vld [vmem:[#allocation2 + $0x30] sm:$0x1]
    %v744 = vld [vmem:[#allocation2 + $0x38] sm:$0x1]
    %v745 = vld [vmem:[#allocation2] sm:$0xfc]
    %v746 = vld [vmem:[#allocation2 + $0x8] sm:$0xfc]
    %v747 = vld [vmem:[#allocation2 + $0x10] sm:$0x3]
    %v748 = vld [vmem:[#allocation2 + $0x18] sm:$0x3]
    %v749 = vld [vmem:[#allocation2 + $0x20] sm:$0xfc]
    %v750 = vld [vmem:[#allocation2 + $0x28] sm:$0xfc]
    %v751 = vld [vmem:[#allocation2 + $0x30] sm:$0x3]
    %v752 = vld [vmem:[#allocation2 + $0x38] sm:$0x3]
    %v753 = vld [vmem:[#allocation2] sm:$0xf8]
    %v754 = vld [vmem:[#allocation2 + $0x8] sm:$0xf8]
    %v755 = vld [vmem:[#allocation2 + $0x10] sm:$0x7]
    %v756 = vld [vmem:[#allocation2 + $0x18] sm:$0x7]
    %v757 = vld [vmem:[#allocation2 + $0x20] sm:$0xf8]
    %v758 = vld [vmem:[#allocation2 + $0x28] sm:$0xf8]
    %v759 = vld [vmem:[#allocation2 + $0x30] sm:$0x7]
    %v760 = vld [vmem:[#allocation2 + $0x38] sm:$0x7]
    %v761 = vld [vmem:[#allocation2] sm:$0xf0]
    %v762 = vld [vmem:[#allocation2 + $0x8] sm:$0xf0]
    %v763 = vld [vmem:[#allocation2 + $0x10] sm:$0xf]
    %v764 = vld [vmem:[#allocation2 + $0x18] sm:$0xf]
    %v765 = vld [vmem:[#allocation2 + $0x20] sm:$0xf0]
    %v766 = vld [vmem:[#allocation2 + $0x28] sm:$0xf0]
    %v767 = vld [vmem:[#allocation2 + $0x30] sm:$0xf]
    %v768 = vld [vmem:[#allocation2 + $0x38] sm:$0xf]
    %vm777 = vcmask 1046528
    %v778 = vrot.slane %v737, 1
    %v779 = vrot.slane %v739, 1
    %v780 = vsel %vm777, %v778, %v779
    %v781 = vrot.slane %v738, 1
    %v782 = vrot.slane %v740, 1
    %v783 = vsel %vm777, %v781, %v782
    %v784 = vrot.slane %v741, 1
    %v785 = vrot.slane %v743, 1
    %v786 = vsel %vm777, %v784, %v785
    %v787 = vrot.slane %v742, 1
    %v788 = vrot.slane %v744, 1
    %v789 = vsel %vm777, %v787, %v788
    %vm802 = vcmask 1045504
    %v803 = vrot.slane %v745, 2
    %v804 = vrot.slane %v747, 2
    %v805 = vsel %vm802, %v803, %v804
    %v806 = vrot.slane %v746, 2
    %v807 = vrot.slane %v748, 2
    %v808 = vsel %vm802, %v806, %v807
    %v809 = vrot.slane %v749, 2
    %v810 = vrot.slane %v751, 2
    %v811 = vsel %vm802, %v809, %v810
    %v812 = vrot.slane %v750, 2
    %v813 = vrot.slane %v752, 2
    %v814 = vsel %vm802, %v812, %v813
    %vm827 = vcmask 1044480
    %v828 = vrot.slane %v753, 3
    %v829 = vrot.slane %v755, 3
    %v830 = vsel %vm827, %v828, %v829
    %v831 = vrot.slane %v754, 3
    %v832 = vrot.slane %v756, 3
    %v833 = vsel %vm827, %v831, %v832
    %v834 = vrot.slane %v757, 3
    %v835 = vrot.slane %v759, 3
    %v836 = vsel %vm827, %v834, %v835
    %v837 = vrot.slane %v758, 3
    %v838 = vrot.slane %v760, 3
    %v839 = vsel %vm827, %v837, %v838
    %vm852 = vcmask 1043456
    %v853 = vrot.slane %v761, 4
    %v854 = vrot.slane %v763, 4
    %v855 = vsel %vm852, %v853, %v854
    %v856 = vrot.slane %v762, 4
    %v857 = vrot.slane %v764, 4
    %v858 = vsel %vm852, %v856, %v857
    %v859 = vrot.slane %v765, 4
    %v860 = vrot.slane %v767, 4
    %v861 = vsel %vm852, %v859, %v860
    %v862 = vrot.slane %v766, 4
    %v863 = vrot.slane %v768, 4
    %v864 = vsel %vm852, %v862, %v863
    %v869 = vld [vmem:[#allocation4] sm:$0xff]
    %v870 = vld [vmem:[#allocation4 + $0x8] sm:$0xff]
    %v871 = vld [vmem:[#allocation4 + $0x10] sm:$0xff]
    %v872 = vld [vmem:[#allocation4 + $0x18] sm:$0xff]
    %v873 = vld [vmem:[#allocation4 + $0x20] sm:$0xff]
    %v874 = vld [vmem:[#allocation4 + $0x28] sm:$0xff]
    %v875 = vld [vmem:[#allocation4 + $0x30] sm:$0xff]
    %v876 = vld [vmem:[#allocation4 + $0x38] sm:$0xff]
    %v877 = vld [vmem:[#allocation4 + $0x40] sm:$0xff]
    %v878 = vld [vmem:[#allocation4 + $0x48] sm:$0xff]
    %v879 = vld [vmem:[#allocation4 + $0x50] sm:$0xff]
    %v880 = vld [vmem:[#allocation4 + $0x58] sm:$0xff]
    %v881 = vld [vmem:[#allocation4 + $0x60] sm:$0xff]
    %v882 = vld [vmem:[#allocation4 + $0x68] sm:$0xff]
    %v883 = vld [vmem:[#allocation4 + $0x70] sm:$0xff]
    %v884 = vld [vmem:[#allocation4 + $0x78] sm:$0xff]
    %v885 = vld [vmem:[#allocation4 + $0x80] sm:$0xff]
    %v886 = vld [vmem:[#allocation4 + $0x88] sm:$0xff]
    %v887 = vld [vmem:[#allocation4 + $0x90] sm:$0xff]
    %v888 = vld [vmem:[#allocation4 + $0x98] sm:$0xff]
    %v889 = vld [vmem:[#allocation4 + $0xa0] sm:$0xff]
    %v890 = vld [vmem:[#allocation4 + $0xa8] sm:$0xff]
    %v891 = vld [vmem:[#allocation4 + $0xb0] sm:$0xff]
    %v892 = vld [vmem:[#allocation4 + $0xb8] sm:$0xff]
    %v893 = vld [vmem:[#allocation4 + $0xc0] sm:$0xff]
    %v894 = vld [vmem:[#allocation4 + $0xc8] sm:$0xff]
    %v895 = vld [vmem:[#allocation4 + $0xd0] sm:$0xff]
    %v896 = vld [vmem:[#allocation4 + $0xd8] sm:$0xff]
    %v897 = vld [vmem:[#allocation4 + $0xe0] sm:$0xff]
    %v898 = vld [vmem:[#allocation4 + $0xe8] sm:$0xff]
    %v899 = vld [vmem:[#allocation4 + $0xf0] sm:$0xff]
    %v900 = vld [vmem:[#allocation4 + $0xf8] sm:$0xff]
    %v901 = vld [vmem:[#allocation4 + $0x100] sm:$0xff]
    %v902 = vld [vmem:[#allocation4 + $0x108] sm:$0xff]
    %v903 = vld [vmem:[#allocation4 + $0x110] sm:$0xff]
    %v904 = vld [vmem:[#allocation4 + $0x118] sm:$0xff]
    %v905 = vld [vmem:[#allocation4 + $0x120] sm:$0xff]
    %v906 = vld [vmem:[#allocation4 + $0x128] sm:$0xff]
    %v907 = vld [vmem:[#allocation4 + $0x130] sm:$0xff]
    %v908 = vld [vmem:[#allocation4 + $0x138] sm:$0xff]
    %v909 = vld [vmem:[#allocation4 + $0x140] sm:$0xff]
    %v910 = vld [vmem:[#allocation4 + $0x148] sm:$0xff]
    %v911 = vld [vmem:[#allocation4 + $0x150] sm:$0xff]
    %v912 = vld [vmem:[#allocation4 + $0x158] sm:$0xff]
    %v913 = vld [vmem:[#allocation4 + $0x160] sm:$0xff]
    %v914 = vld [vmem:[#allocation4 + $0x168] sm:$0xff]
    %v915 = vld [vmem:[#allocation4 + $0x170] sm:$0xff]
    %v916 = vld [vmem:[#allocation4 + $0x178] sm:$0xff]
    %v917 = vld [vmem:[#allocation4 + $0x180] sm:$0xff]
    %v918 = vld [vmem:[#allocation4 + $0x188] sm:$0xff]
    %v919 = vld [vmem:[#allocation4 + $0x190] sm:$0xff]
    %v920 = vld [vmem:[#allocation4 + $0x198] sm:$0xff]
    %v921 = vld [vmem:[#allocation4 + $0x1a0] sm:$0xff]
    %v922 = vld [vmem:[#allocation4 + $0x1a8] sm:$0xff]
    %v923 = vld [vmem:[#allocation4 + $0x1b0] sm:$0xff]
    %v924 = vld [vmem:[#allocation4 + $0x1b8] sm:$0xff]
    %v925 = vld [vmem:[#allocation4 + $0x1c0] sm:$0xff]
    %v926 = vld [vmem:[#allocation4 + $0x1c8] sm:$0xff]
    %v927 = vld [vmem:[#allocation4 + $0x1d0] sm:$0xff]
    %v928 = vld [vmem:[#allocation4 + $0x1d8] sm:$0xff]
    %v929 = vld [vmem:[#allocation4 + $0x1e0] sm:$0xff]
    %v930 = vld [vmem:[#allocation4 + $0x1e8] sm:$0xff]
    %v931 = vld [vmem:[#allocation4 + $0x1f0] sm:$0xff]
    %v932 = vld [vmem:[#allocation4 + $0x1f8] sm:$0xff]
    %v933 = vld [vmem:[#allocation4 + $0x200] sm:$0xff]
    %v934 = vld [vmem:[#allocation4 + $0x208] sm:$0xff]
    %v935 = vld [vmem:[#allocation4 + $0x210] sm:$0xff]
    %v936 = vld [vmem:[#allocation4 + $0x218] sm:$0xff]
    %v937 = vld [vmem:[#allocation4 + $0x220] sm:$0xff]
    %v938 = vld [vmem:[#allocation4 + $0x228] sm:$0xff]
    %v939 = vld [vmem:[#allocation4 + $0x230] sm:$0xff]
    %v940 = vld [vmem:[#allocation4 + $0x238] sm:$0xff]
    %v941 = vld [vmem:[#allocation4 + $0x240] sm:$0xff]
    %v942 = vld [vmem:[#allocation4 + $0x248] sm:$0xff]
    %v943 = vld [vmem:[#allocation4 + $0x250] sm:$0xff]
    %v944 = vld [vmem:[#allocation4 + $0x258] sm:$0xff]
    %v945 = vld [vmem:[#allocation4 + $0x260] sm:$0xff]
    %v946 = vld [vmem:[#allocation4 + $0x268] sm:$0xff]
    %v947 = vld [vmem:[#allocation4 + $0x270] sm:$0xff]
    %v948 = vld [vmem:[#allocation4 + $0x278] sm:$0xff]
    %v949 = vld [vmem:[#allocation4 + $0x280] sm:$0xff]
    %v950 = vld [vmem:[#allocation4 + $0x288] sm:$0xff]
    %v951 = vld [vmem:[#allocation4 + $0x290] sm:$0xff]
    %v952 = vld [vmem:[#allocation4 + $0x298] sm:$0xff]
    %v953 = vld [vmem:[#allocation4 + $0x2a0] sm:$0xff]
    %v954 = vld [vmem:[#allocation4 + $0x2a8] sm:$0xff]
    %v955 = vld [vmem:[#allocation4 + $0x2b0] sm:$0xff]
    %v956 = vld [vmem:[#allocation4 + $0x2b8] sm:$0xff]
    %v957 = vld [vmem:[#allocation4 + $0x2c0] sm:$0xff]
    %v958 = vld [vmem:[#allocation4 + $0x2c8] sm:$0xff]
    %v959 = vld [vmem:[#allocation4 + $0x2d0] sm:$0xff]
    %v960 = vld [vmem:[#allocation4 + $0x2d8] sm:$0xff]
    %v961 = vld [vmem:[#allocation4 + $0x2e0] sm:$0xff]
    %v962 = vld [vmem:[#allocation4 + $0x2e8] sm:$0xff]
    %v963 = vld [vmem:[#allocation4 + $0x2f0] sm:$0xff]
    %v964 = vld [vmem:[#allocation4 + $0x2f8] sm:$0xff]
    %v965 = vld [vmem:[#allocation4 + $0x300] sm:$0xff]
    %v966 = vld [vmem:[#allocation4 + $0x308] sm:$0xff]
    %v967 = vld [vmem:[#allocation4 + $0x310] sm:$0xff]
    %v968 = vld [vmem:[#allocation4 + $0x318] sm:$0xff]
    %v969 = vld [vmem:[#allocation4 + $0x320] sm:$0xff]
    %v970 = vld [vmem:[#allocation4 + $0x328] sm:$0xff]
    %v971 = vld [vmem:[#allocation4 + $0x330] sm:$0xff]
    %v972 = vld [vmem:[#allocation4 + $0x338] sm:$0xff]
    %v973 = vld [vmem:[#allocation4 + $0x340] sm:$0xff]
    %v974 = vld [vmem:[#allocation4 + $0x348] sm:$0xff]
    %v975 = vld [vmem:[#allocation4 + $0x350] sm:$0xff]
    %v976 = vld [vmem:[#allocation4 + $0x358] sm:$0xff]
    %v977 = vld [vmem:[#allocation4 + $0x360] sm:$0xff]
    %v978 = vld [vmem:[#allocation4 + $0x368] sm:$0xff]
    %v979 = vld [vmem:[#allocation4 + $0x370] sm:$0xff]
    %v980 = vld [vmem:[#allocation4 + $0x378] sm:$0xff]
    %v981 = vld [vmem:[#allocation4 + $0x380] sm:$0xff]
    %v982 = vld [vmem:[#allocation4 + $0x388] sm:$0xff]
    %v983 = vld [vmem:[#allocation4 + $0x390] sm:$0xff]
    %v984 = vld [vmem:[#allocation4 + $0x398] sm:$0xff]
    %v985 = vld [vmem:[#allocation4 + $0x3a0] sm:$0xff]
    %v986 = vld [vmem:[#allocation4 + $0x3a8] sm:$0xff]
    %v987 = vld [vmem:[#allocation4 + $0x3b0] sm:$0xff]
    %v988 = vld [vmem:[#allocation4 + $0x3b8] sm:$0xff]
    %v989 = vld [vmem:[#allocation4 + $0x3c0] sm:$0xff]
    %v990 = vld [vmem:[#allocation4 + $0x3c8] sm:$0xff]
    %v991 = vld [vmem:[#allocation4 + $0x3d0] sm:$0xff]
    %v992 = vld [vmem:[#allocation4 + $0x3d8] sm:$0xff]
    %v993 = vld [vmem:[#allocation4 + $0x3e0] sm:$0xff]
    %v994 = vld [vmem:[#allocation4 + $0x3e8] sm:$0xff]
    %v995 = vld [vmem:[#allocation4 + $0x3f0] sm:$0xff]
    %v996 = vld [vmem:[#allocation4 + $0x3f8] sm:$0xff]
    %v997 = vld [vmem:[#allocation4 + $0x400] sm:$0xff]
    %v998 = vld [vmem:[#allocation4 + $0x408] sm:$0xff]
    %v999 = vld [vmem:[#allocation4 + $0x410] sm:$0xff]
    %v1000 = vld [vmem:[#allocation4 + $0x418] sm:$0xff]
    %v1001 = vld [vmem:[#allocation4 + $0x420] sm:$0xff]
    %v1002 = vld [vmem:[#allocation4 + $0x428] sm:$0xff]
    %v1003 = vld [vmem:[#allocation4 + $0x430] sm:$0xff]
    %v1004 = vld [vmem:[#allocation4 + $0x438] sm:$0xff]
    %v1005 = vld [vmem:[#allocation4 + $0x440] sm:$0xff]
    %v1006 = vld [vmem:[#allocation4 + $0x448] sm:$0xff]
    %v1007 = vld [vmem:[#allocation4 + $0x450] sm:$0xff]
    %v1008 = vld [vmem:[#allocation4 + $0x458] sm:$0xff]
    %v1009 = vld [vmem:[#allocation4 + $0x460] sm:$0xff]
    %v1010 = vld [vmem:[#allocation4 + $0x468] sm:$0xff]
    %v1011 = vld [vmem:[#allocation4 + $0x470] sm:$0xff]
    %v1012 = vld [vmem:[#allocation4 + $0x478] sm:$0xff]
    %v1013 = vld [vmem:[#allocation4 + $0x480] sm:$0xff]
    %v1014 = vld [vmem:[#allocation4 + $0x488] sm:$0xff]
    %v1015 = vld [vmem:[#allocation4 + $0x490] sm:$0xff]
    %v1016 = vld [vmem:[#allocation4 + $0x498] sm:$0xff]
    %v1017 = vld [vmem:[#allocation4 + $0x4a0] sm:$0xff]
    %v1018 = vld [vmem:[#allocation4 + $0x4a8] sm:$0xff]
    %v1019 = vld [vmem:[#allocation4 + $0x4b0] sm:$0xff]
    %v1020 = vld [vmem:[#allocation4 + $0x4b8] sm:$0xff]
    %v1021 = vld [vmem:[#allocation4 + $0x4c0] sm:$0xff]
    %v1022 = vld [vmem:[#allocation4 + $0x4c8] sm:$0xff]
    %v1023 = vld [vmem:[#allocation4 + $0x4d0] sm:$0xff]
    %v1024 = vld [vmem:[#allocation4 + $0x4d8] sm:$0xff]
    %v1025 = vld [vmem:[#allocation4 + $0x4e0] sm:$0xff]
    %v1026 = vld [vmem:[#allocation4 + $0x4e8] sm:$0xff]
    %v1027 = vld [vmem:[#allocation4 + $0x4f0] sm:$0xff]
    %v1028 = vld [vmem:[#allocation4 + $0x4f8] sm:$0xff]
    %v1029 = vld [vmem:[%s4] sm:$0x1]
    %v1031 = vlaneseq
    %v1032 = vshrl.u32 %v1031, 7
    %v1033 = vsub.s32 0, %v1032
    %v1034 = vrot.slane %v1029, %v1033
    %1036 = vmatprep.subr.mxu0 0.0
    %1037 = vmatpush1.msra.mxu0 %v869
    %1038 = vmatprep.subr.mxu0 0.0
    %1039 = vmatpush1.msra.mxu0 %v870
    %1040 = vmatprep.subr.mxu0 0.0
    %1041 = vmatpush1.msra.mxu0 %v871
    %1042 = vmatprep.subr.mxu0 0.0
    %1043 = vmatpush1.msra.mxu0 %v872
    %1044 = vmatprep.subr.mxu0 0.0
    %1045 = vmatpush1.msra.mxu0 %v873
    %1046 = vmatprep.subr.mxu0 0.0
    %1047 = vmatpush1.msra.mxu0 %v874
    %1048 = vmatprep.subr.mxu0 0.0
    %1049 = vmatpush1.msra.mxu0 %v875
    %1050 = vmatprep.subr.mxu0 0.0
    %1051 = vmatpush1.msra.mxu0 %v876
    %1052 = vmatprep.subr.mxu0 0.0
    %1053 = vmatpush1.msra.mxu0 %v877
    %1054 = vmatprep.subr.mxu0 0.0
    %1055 = vmatpush1.msra.mxu0 %v878
    %1056 = vmatprep.subr.mxu0 0.0
    %1057 = vmatpush1.msra.mxu0 %v879
    %1058 = vmatprep.subr.mxu0 0.0
    %1059 = vmatpush1.msra.mxu0 %v880
    %1060 = vmatprep.subr.mxu0 0.0
    %1061 = vmatpush1.msra.mxu0 %v881
    %1062 = vmatprep.subr.mxu0 0.0
    %1063 = vmatpush1.msra.mxu0 %v882
    %1064 = vmatprep.subr.mxu0 0.0
    %1065 = vmatpush1.msra.mxu0 %v883
    %1066 = vmatprep.subr.mxu0 0.0
    %1067 = vmatpush1.msra.mxu0 %v884
    %1068 = vmatprep.subr.mxu0 0.0
    %1069 = vmatpush1.msra.mxu0 %v885
    %1070 = vmatprep.subr.mxu0 0.0
    %1071 = vmatpush1.msra.mxu0 %v886
    %1072 = vmatprep.subr.mxu0 0.0
    %1073 = vmatpush1.msra.mxu0 %v887
    %1074 = vmatprep.subr.mxu0 0.0
    %1075 = vmatpush1.msra.mxu0 %v888
    %1076 = vmatprep.subr.mxu0 0.0
    %1077 = vmatpush1.msra.mxu0 %v889
    %1078 = vmatprep.subr.mxu0 0.0
    %1079 = vmatpush1.msra.mxu0 %v890
    %1080 = vmatprep.subr.mxu0 0.0
    %1081 = vmatpush1.msra.mxu0 %v891
    %1082 = vmatprep.subr.mxu0 0.0
    %1083 = vmatpush1.msra.mxu0 %v892
    %1084 = vmatprep.subr.mxu0 0.0
    %1085 = vmatpush1.msra.mxu0 %v893
    %1086 = vmatprep.subr.mxu0 0.0
    %1087 = vmatpush1.msra.mxu0 %v894
    %1088 = vmatprep.subr.mxu0 0.0
    %1089 = vmatpush1.msra.mxu0 %v895
    %1090 = vmatprep.subr.mxu0 0.0
    %1091 = vmatpush1.msra.mxu0 %v896
    %1092 = vmatprep.subr.mxu0 0.0
    %1093 = vmatpush1.msra.mxu0 %v897
    %1094 = vmatprep.subr.mxu0 0.0
    %1095 = vmatpush1.msra.mxu0 %v898
    %1096 = vmatprep.subr.mxu0 0.0
    %1097 = vmatpush1.msra.mxu0 %v899
    %1098 = vmatprep.subr.mxu0 0.0
    %1099 = vmatpush1.msra.mxu0 %v900
    %1100 = vmatprep.mubr.f32.mxu0 %v734
    %1101 = vmatmul.mubr.f32.gmra.mrb[0].mxu0 %v733
    %v1102 = vpop.f32.mrb[0].mxu0
    %v1103 = vadd.f32 %v1034, %v1102
    %v1104 = vpop.f32.mrb[0].mxu0
    %1105 = vmatprep.mubr.f32.mxu0 %v736
    %1106 = vmatmul.mubr.f32.gmra.mrb[0].mxu0 %v735
    %v1107 = vpop.f32.mrb[0].mxu0
    %v1108 = vadd.f32 %v1034, %v1107
    %v1109 = vpop.f32.mrb[0].mxu0
    %1110 = vdwg.mxu0
    %1111 = vmatprep.subr.mxu0 0.0
    %1112 = vmatpush1.msra.mxu0 %v901
    %1113 = vmatprep.subr.mxu0 0.0
    %1114 = vmatpush1.msra.mxu0 %v902
    %1115 = vmatprep.subr.mxu0 0.0
    %1116 = vmatpush1.msra.mxu0 %v903
    %1117 = vmatprep.subr.mxu0 0.0
    %1118 = vmatpush1.msra.mxu0 %v904
    %1119 = vmatprep.subr.mxu0 0.0
    %1120 = vmatpush1.msra.mxu0 %v905
    %1121 = vmatprep.subr.mxu0 0.0
    %1122 = vmatpush1.msra.mxu0 %v906
    %1123 = vmatprep.subr.mxu0 0.0
    %1124 = vmatpush1.msra.mxu0 %v907
    %1125 = vmatprep.subr.mxu0 0.0
    %1126 = vmatpush1.msra.mxu0 %v908
    %1127 = vmatprep.subr.mxu0 0.0
    %1128 = vmatpush1.msra.mxu0 %v909
    %1129 = vmatprep.subr.mxu0 0.0
    %1130 = vmatpush1.msra.mxu0 %v910
    %1131 = vmatprep.subr.mxu0 0.0
    %1132 = vmatpush1.msra.mxu0 %v911
    %1133 = vmatprep.subr.mxu0 0.0
    %1134 = vmatpush1.msra.mxu0 %v912
    %1135 = vmatprep.subr.mxu0 0.0
    %1136 = vmatpush1.msra.mxu0 %v913
    %1137 = vmatprep.subr.mxu0 0.0
    %1138 = vmatpush1.msra.mxu0 %v914
    %1139 = vmatprep.subr.mxu0 0.0
    %1140 = vmatpush1.msra.mxu0 %v915
    %1141 = vmatprep.subr.mxu0 0.0
    %1142 = vmatpush1.msra.mxu0 %v916
    %1143 = vmatprep.subr.mxu0 0.0
    %1144 = vmatpush1.msra.mxu0 %v917
    %1145 = vmatprep.subr.mxu0 0.0
    %1146 = vmatpush1.msra.mxu0 %v918
    %1147 = vmatprep.subr.mxu0 0.0
    %1148 = vmatpush1.msra.mxu0 %v919
    %1149 = vmatprep.subr.mxu0 0.0
    %1150 = vmatpush1.msra.mxu0 %v920
    %1151 = vmatprep.subr.mxu0 0.0
    %1152 = vmatpush1.msra.mxu0 %v921
    %1153 = vmatprep.subr.mxu0 0.0
    %1154 = vmatpush1.msra.mxu0 %v922
    %1155 = vmatprep.subr.mxu0 0.0
    %1156 = vmatpush1.msra.mxu0 %v923
    %1157 = vmatprep.subr.mxu0 0.0
    %1158 = vmatpush1.msra.mxu0 %v924
    %1159 = vmatprep.subr.mxu0 0.0
    %1160 = vmatpush1.msra.mxu0 %v925
    %1161 = vmatprep.subr.mxu0 0.0
    %1162 = vmatpush1.msra.mxu0 %v926
    %1163 = vmatprep.subr.mxu0 0.0
    %1164 = vmatpush1.msra.mxu0 %v927
    %1165 = vmatprep.subr.mxu0 0.0
    %1166 = vmatpush1.msra.mxu0 %v928
    %1167 = vmatprep.subr.mxu0 0.0
    %1168 = vmatpush1.msra.mxu0 %v929
    %1169 = vmatprep.subr.mxu0 0.0
    %1170 = vmatpush1.msra.mxu0 %v930
    %1171 = vmatprep.subr.mxu0 0.0
    %1172 = vmatpush1.msra.mxu0 %v931
    %1173 = vmatprep.subr.mxu0 0.0
    %1174 = vmatpush1.msra.mxu0 %v932
    %1175 = vmatprep.mubr.f32.mxu0 %v783
    %1176 = vmatmul.mubr.f32.gmra.mrb[0].mxu0 %v780
    %v1177 = vpop.f32.mrb[0].mxu0
    %v1178 = vadd.f32 %v1103, %v1177
    %v1179 = vpop.f32.mrb[0].mxu0
    %1180 = vmatprep.mubr.f32.mxu0 %v789
    %1181 = vmatmul.mubr.f32.gmra.mrb[0].mxu0 %v786
    %v1182 = vpop.f32.mrb[0].mxu0
    %v1183 = vadd.f32 %v1108, %v1182
    %v1184 = vpop.f32.mrb[0].mxu0
    %1185 = vdwg.mxu0
    %1186 = vmatprep.subr.mxu0 0.0
    %1187 = vmatpush1.msra.mxu0 %v933
    %1188 = vmatprep.subr.mxu0 0.0
    %1189 = vmatpush1.msra.mxu0 %v934
    %1190 = vmatprep.subr.mxu0 0.0
    %1191 = vmatpush1.msra.mxu0 %v935
    %1192 = vmatprep.subr.mxu0 0.0
    %1193 = vmatpush1.msra.mxu0 %v936
    %1194 = vmatprep.subr.mxu0 0.0
    %1195 = vmatpush1.msra.mxu0 %v937
    %1196 = vmatprep.subr.mxu0 0.0
    %1197 = vmatpush1.msra.mxu0 %v938
    %1198 = vmatprep.subr.mxu0 0.0
    %1199 = vmatpush1.msra.mxu0 %v939
    %1200 = vmatprep.subr.mxu0 0.0
    %1201 = vmatpush1.msra.mxu0 %v940
    %1202 = vmatprep.subr.mxu0 0.0
    %1203 = vmatpush1.msra.mxu0 %v941
    %1204 = vmatprep.subr.mxu0 0.0
    %1205 = vmatpush1.msra.mxu0 %v942
    %1206 = vmatprep.subr.mxu0 0.0
    %1207 = vmatpush1.msra.mxu0 %v943
    %1208 = vmatprep.subr.mxu0 0.0
    %1209 = vmatpush1.msra.mxu0 %v944
    %1210 = vmatprep.subr.mxu0 0.0
    %1211 = vmatpush1.msra.mxu0 %v945
    %1212 = vmatprep.subr.mxu0 0.0
    %1213 = vmatpush1.msra.mxu0 %v946
    %1214 = vmatprep.subr.mxu0 0.0
    %1215 = vmatpush1.msra.mxu0 %v947
    %1216 = vmatprep.subr.mxu0 0.0
    %1217 = vmatpush1.msra.mxu0 %v948
    %1218 = vmatprep.subr.mxu0 0.0
    %1219 = vmatpush1.msra.mxu0 %v949
    %1220 = vmatprep.subr.mxu0 0.0
    %1221 = vmatpush1.msra.mxu0 %v950
    %1222 = vmatprep.subr.mxu0 0.0
    %1223 = vmatpush1.msra.mxu0 %v951
    %1224 = vmatprep.subr.mxu0 0.0
    %1225 = vmatpush1.msra.mxu0 %v952
    %1226 = vmatprep.subr.mxu0 0.0
    %1227 = vmatpush1.msra.mxu0 %v953
    %1228 = vmatprep.subr.mxu0 0.0
    %1229 = vmatpush1.msra.mxu0 %v954
    %1230 = vmatprep.subr.mxu0 0.0
    %1231 = vmatpush1.msra.mxu0 %v955
    %1232 = vmatprep.subr.mxu0 0.0
    %1233 = vmatpush1.msra.mxu0 %v956
    %1234 = vmatprep.subr.mxu0 0.0
    %1235 = vmatpush1.msra.mxu0 %v957
    %1236 = vmatprep.subr.mxu0 0.0
    %1237 = vmatpush1.msra.mxu0 %v958
    %1238 = vmatprep.subr.mxu0 0.0
    %1239 = vmatpush1.msra.mxu0 %v959
    %1240 = vmatprep.subr.mxu0 0.0
    %1241 = vmatpush1.msra.mxu0 %v960
    %1242 = vmatprep.subr.mxu0 0.0
    %1243 = vmatpush1.msra.mxu0 %v961
    %1244 = vmatprep.subr.mxu0 0.0
    %1245 = vmatpush1.msra.mxu0 %v962
    %1246 = vmatprep.subr.mxu0 0.0
    %1247 = vmatpush1.msra.mxu0 %v963
    %1248 = vmatprep.subr.mxu0 0.0
    %1249 = vmatpush1.msra.mxu0 %v964
    %1250 = vmatprep.mubr.f32.mxu0 %v808
    %1251 = vmatmul.mubr.f32.gmra.mrb[0].mxu0 %v805
    %v1252 = vpop.f32.mrb[0].mxu0
    %v1253 = vadd.f32 %v1178, %v1252
    %v1254 = vpop.f32.mrb[0].mxu0
    %1255 = vmatprep.mubr.f32.mxu0 %v814
    %1256 = vmatmul.mubr.f32.gmra.mrb[0].mxu0 %v811
    %v1257 = vpop.f32.mrb[0].mxu0
    %v1258 = vadd.f32 %v1183, %v1257
    %v1259 = vpop.f32.mrb[0].mxu0
    %1260 = vdwg.mxu0
    %1261 = vmatprep.subr.mxu0 0.0
    %1262 = vmatpush1.msra.mxu0 %v965
    %1263 = vmatprep.subr.mxu0 0.0
    %1264 = vmatpush1.msra.mxu0 %v966
    %1265 = vmatprep.subr.mxu0 0.0
    %1266 = vmatpush1.msra.mxu0 %v967
    %1267 = vmatprep.subr.mxu0 0.0
    %1268 = vmatpush1.msra.mxu0 %v968
    %1269 = vmatprep.subr.mxu0 0.0
    %1270 = vmatpush1.msra.mxu0 %v969
    %1271 = vmatprep.subr.mxu0 0.0
    %1272 = vmatpush1.msra.mxu0 %v970
    %1273 = vmatprep.subr.mxu0 0.0
    %1274 = vmatpush1.msra.mxu0 %v971
    %1275 = vmatprep.subr.mxu0 0.0
    %1276 = vmatpush1.msra.mxu0 %v972
    %1277 = vmatprep.subr.mxu0 0.0
    %1278 = vmatpush1.msra.mxu0 %v973
    %1279 = vmatprep.subr.mxu0 0.0
    %1280 = vmatpush1.msra.mxu0 %v974
    %1281 = vmatprep.subr.mxu0 0.0
    %1282 = vmatpush1.msra.mxu0 %v975
    %1283 = vmatprep.subr.mxu0 0.0
    %1284 = vmatpush1.msra.mxu0 %v976
    %1285 = vmatprep.subr.mxu0 0.0
    %1286 = vmatpush1.msra.mxu0 %v977
    %1287 = vmatprep.subr.mxu0 0.0
    %1288 = vmatpush1.msra.mxu0 %v978
    %1289 = vmatprep.subr.mxu0 0.0
    %1290 = vmatpush1.msra.mxu0 %v979
    %1291 = vmatprep.subr.mxu0 0.0
    %1292 = vmatpush1.msra.mxu0 %v980
    %1293 = vmatprep.subr.mxu0 0.0
    %1294 = vmatpush1.msra.mxu0 %v981
    %1295 = vmatprep.subr.mxu0 0.0
    %1296 = vmatpush1.msra.mxu0 %v982
    %1297 = vmatprep.subr.mxu0 0.0
    %1298 = vmatpush1.msra.mxu0 %v983
    %1299 = vmatprep.subr.mxu0 0.0
    %1300 = vmatpush1.msra.mxu0 %v984
    %1301 = vmatprep.subr.mxu0 0.0
    %1302 = vmatpush1.msra.mxu0 %v985
    %1303 = vmatprep.subr.mxu0 0.0
    %1304 = vmatpush1.msra.mxu0 %v986
    %1305 = vmatprep.subr.mxu0 0.0
    %1306 = vmatpush1.msra.mxu0 %v987
    %1307 = vmatprep.subr.mxu0 0.0
    %1308 = vmatpush1.msra.mxu0 %v988
    %1309 = vmatprep.subr.mxu0 0.0
    %1310 = vmatpush1.msra.mxu0 %v989
    %1311 = vmatprep.subr.mxu0 0.0
    %1312 = vmatpush1.msra.mxu0 %v990
    %1313 = vmatprep.subr.mxu0 0.0
    %1314 = vmatpush1.msra.mxu0 %v991
    %1315 = vmatprep.subr.mxu0 0.0
    %1316 = vmatpush1.msra.mxu0 %v992
    %1317 = vmatprep.subr.mxu0 0.0
    %1318 = vmatpush1.msra.mxu0 %v993
    %1319 = vmatprep.subr.mxu0 0.0
    %1320 = vmatpush1.msra.mxu0 %v994
    %1321 = vmatprep.subr.mxu0 0.0
    %1322 = vmatpush1.msra.mxu0 %v995
    %1323 = vmatprep.subr.mxu0 0.0
    %1324 = vmatpush1.msra.mxu0 %v996
    %1325 = vmatprep.mubr.f32.mxu0 %v833
    %1326 = vmatmul.mubr.f32.gmra.mrb[0].mxu0 %v830
    %v1327 = vpop.f32.mrb[0].mxu0
    %v1328 = vadd.f32 %v1253, %v1327
    %v1329 = vpop.f32.mrb[0].mxu0
    %1330 = vmatprep.mubr.f32.mxu0 %v839
    %1331 = vmatmul.mubr.f32.gmra.mrb[0].mxu0 %v836
    %v1332 = vpop.f32.mrb[0].mxu0
    %v1333 = vadd.f32 %v1258, %v1332
    %v1334 = vpop.f32.mrb[0].mxu0
    %1335 = vdwg.mxu0
    %1336 = vmatprep.subr.mxu0 0.0
    %1337 = vmatpush1.msra.mxu0 %v997
    %1338 = vmatprep.subr.mxu0 0.0
    %1339 = vmatpush1.msra.mxu0 %v998
    %1340 = vmatprep.subr.mxu0 0.0
    %1341 = vmatpush1.msra.mxu0 %v999
    %1342 = vmatprep.subr.mxu0 0.0
    %1343 = vmatpush1.msra.mxu0 %v1000
    %1344 = vmatprep.subr.mxu0 0.0
    %1345 = vmatpush1.msra.mxu0 %v1001
    %1346 = vmatprep.subr.mxu0 0.0
    %1347 = vmatpush1.msra.mxu0 %v1002
    %1348 = vmatprep.subr.mxu0 0.0
    %1349 = vmatpush1.msra.mxu0 %v1003
    %1350 = vmatprep.subr.mxu0 0.0
    %1351 = vmatpush1.msra.mxu0 %v1004
    %1352 = vmatprep.subr.mxu0 0.0
    %1353 = vmatpush1.msra.mxu0 %v1005
    %1354 = vmatprep.subr.mxu0 0.0
    %1355 = vmatpush1.msra.mxu0 %v1006
    %1356 = vmatprep.subr.mxu0 0.0
    %1357 = vmatpush1.msra.mxu0 %v1007
    %1358 = vmatprep.subr.mxu0 0.0
    %1359 = vmatpush1.msra.mxu0 %v1008
    %1360 = vmatprep.subr.mxu0 0.0
    %1361 = vmatpush1.msra.mxu0 %v1009
    %1362 = vmatprep.subr.mxu0 0.0
    %1363 = vmatpush1.msra.mxu0 %v1010
    %1364 = vmatprep.subr.mxu0 0.0
    %1365 = vmatpush1.msra.mxu0 %v1011
    %1366 = vmatprep.subr.mxu0 0.0
    %1367 = vmatpush1.msra.mxu0 %v1012
    %1368 = vmatprep.subr.mxu0 0.0
    %1369 = vmatpush1.msra.mxu0 %v1013
    %1370 = vmatprep.subr.mxu0 0.0
    %1371 = vmatpush1.msra.mxu0 %v1014
    %1372 = vmatprep.subr.mxu0 0.0
    %1373 = vmatpush1.msra.mxu0 %v1015
    %1374 = vmatprep.subr.mxu0 0.0
    %1375 = vmatpush1.msra.mxu0 %v1016
    %1376 = vmatprep.subr.mxu0 0.0
    %1377 = vmatpush1.msra.mxu0 %v1017
    %1378 = vmatprep.subr.mxu0 0.0
    %1379 = vmatpush1.msra.mxu0 %v1018
    %1380 = vmatprep.subr.mxu0 0.0
    %1381 = vmatpush1.msra.mxu0 %v1019
    %1382 = vmatprep.subr.mxu0 0.0
    %1383 = vmatpush1.msra.mxu0 %v1020
    %1384 = vmatprep.subr.mxu0 0.0
    %1385 = vmatpush1.msra.mxu0 %v1021
    %1386 = vmatprep.subr.mxu0 0.0
    %1387 = vmatpush1.msra.mxu0 %v1022
    %1388 = vmatprep.subr.mxu0 0.0
    %1389 = vmatpush1.msra.mxu0 %v1023
    %1390 = vmatprep.subr.mxu0 0.0
    %1391 = vmatpush1.msra.mxu0 %v1024
    %1392 = vmatprep.subr.mxu0 0.0
    %1393 = vmatpush1.msra.mxu0 %v1025
    %1394 = vmatprep.subr.mxu0 0.0
    %1395 = vmatpush1.msra.mxu0 %v1026
    %1396 = vmatprep.subr.mxu0 0.0
    %1397 = vmatpush1.msra.mxu0 %v1027
    %1398 = vmatprep.subr.mxu0 0.0
    %1399 = vmatpush1.msra.mxu0 %v1028
    %1400 = vmatprep.mubr.f32.mxu0 %v858
    %1401 = vmatmul.mubr.f32.gmra.mrb[0].mxu0 %v855
    %v1402 = vpop.f32.mrb[0].mxu0
    %v1403 = vadd.f32 %v1328, %v1402
    %v1404 = vpop.f32.mrb[0].mxu0
    %1405 = vmatprep.mubr.f32.mxu0 %v864
    %1406 = vmatmul.mubr.f32.gmra.mrb[0].mxu0 %v861
    %v1407 = vpop.f32.mrb[0].mxu0
    %v1408 = vadd.f32 %v1333, %v1407
    %v1409 = vpop.f32.mrb[0].mxu0
    %1410 = vdwg.mxu0
    %v1411 = vmax.f32 %v1403, 0.0
    %v1412 = vmax.f32 %v1408, 0.0
    %1415 = vrot.lane.b32.xlu0 %v1411, 64
    %v1416 = vpop.permute.xlu0 %1415
    %1417 = vrot.lane.b32.xlu0 %v1412, 64
    %v1418 = vpop.permute.xlu0 %1417
    %v1421 = vmax.f32 %v1411, %v1416
    %v1422 = vmax.f32 %v1412, %v1418
    %vm1423 = vcmask 523264
    %1424 = vst.msk [vmem:[#allocation3] sm:$0xff] %vm1423, %v1421
    %1425 = vst.msk [vmem:[#allocation3 + $0x8] sm:$0xff] %vm1423, %v1422
    %v1426 = vld [vmem:[#allocation3] sm:$0x3]
    %v1427 = vld [vmem:[#allocation3 + $0x8] sm:$0x3]
    %vm1428 = vcmask 517120
    %v1429 = vsel %vm1428, %v1426, -inf
    %v1430 = vrot.slane %v1429, 4
    %v1431 = vmax.f32 %v1429, %v1430
    %v1432 = vrot.slane %v1431, 2
    %v1433 = vmax.f32 %v1431, %v1432
    %v1434 = vrot.slane %v1433, 1
    %v1435 = vmax.f32 %v1433, %v1434
    %v1436 = vsel %vm1428, %v1427, -inf
    %v1437 = vrot.slane %v1436, 4
    %v1438 = vmax.f32 %v1436, %v1437
    %v1439 = vrot.slane %v1438, 2
    %v1440 = vmax.f32 %v1438, %v1439
    %v1441 = vrot.slane %v1440, 1
    %v1442 = vmax.f32 %v1440, %v1441
    %v1443 = vld [vmem:[#allocation3 + $0x2] sm:$0x3]
    %v1444 = vld [vmem:[#allocation3 + $0xa] sm:$0x3]
    %v1445 = vsel %vm1428, %v1443, -inf
    %v1446 = vrot.slane %v1445, 4
    %v1447 = vmax.f32 %v1445, %v1446
    %v1448 = vrot.slane %v1447, 2
    %v1449 = vmax.f32 %v1447, %v1448
    %v1450 = vrot.slane %v1449, 1
    %v1451 = vmax.f32 %v1449, %v1450
    %v1452 = vsel %vm1428, %v1444, -inf
    %v1453 = vrot.slane %v1452, 4
    %v1454 = vmax.f32 %v1452, %v1453
    %v1455 = vrot.slane %v1454, 2
    %v1456 = vmax.f32 %v1454, %v1455
    %v1457 = vrot.slane %v1456, 1
    %v1458 = vmax.f32 %v1456, %v1457
    %vm1461 = vcmask 1041409
    %v1462 = vsel %vm1461, %v1442, %v1435
    %v1466 = vsel %vm1461, %v1458, %v1451
    %1467 = vrot.lane.b32.xlu0 %v1466, 64
    %v1468 = vpop.permute.xlu0 %1467
    %v1470 = vsel %vm1423, %v1462, %v1468
    %v1471 = vld [vmem:[%s5] sm:$0xff]
    %v1472 = vld [vmem:[%s5 + $0x8] sm:$0xff]
    %v1473 = vld [vmem:[%s5 + $0x10] sm:$0xff]
    %v1474 = vld [vmem:[%s5 + $0x18] sm:$0xff]
    %v1475 = vld [vmem:[%s5 + $0x20] sm:$0xff]
    %v1476 = vld [vmem:[%s5 + $0x28] sm:$0xff]
    %v1477 = vld [vmem:[%s5 + $0x30] sm:$0xff]
    %v1478 = vld [vmem:[%s5 + $0x38] sm:$0xff]
    %v1479 = vld [vmem:[%s5 + $0x40] sm:$0xff]
    %v1480 = vld [vmem:[%s5 + $0x48] sm:$0xff]
    %v1481 = vld [vmem:[%s5 + $0x50] sm:$0xff]
    %v1482 = vld [vmem:[%s5 + $0x58] sm:$0xff]
    %v1483 = vld [vmem:[%s5 + $0x60] sm:$0xff]
    %v1484 = vld [vmem:[%s5 + $0x68] sm:$0xff]
    %v1485 = vld [vmem:[%s5 + $0x70] sm:$0xff]
    %v1486 = vld [vmem:[%s5 + $0x78] sm:$0xff]
    %v1487 = vld [vmem:[%s6] sm:$0x1]
    %v1489 = vlaneseq
    %v1490 = vshrl.u32 %v1489, 7
    %v1491 = vsub.s32 0, %v1490
    %v1492 = vrot.slane %v1487, %v1491
    %1494 = vmatprep.subr.mxu0 0.0
    %1495 = vmatpush1.msra.mxu0 %v1471
    %1496 = vmatprep.subr.mxu0 0.0
    %1497 = vmatpush1.msra.mxu0 %v1472
    %1498 = vmatprep.subr.mxu0 0.0
    %1499 = vmatpush1.msra.mxu0 %v1473
    %1500 = vmatprep.subr.mxu0 0.0
    %1501 = vmatpush1.msra.mxu0 %v1474
    %1502 = vmatprep.subr.mxu0 0.0
    %1503 = vmatpush1.msra.mxu0 %v1475
    %1504 = vmatprep.subr.mxu0 0.0
    %1505 = vmatpush1.msra.mxu0 %v1476
    %1506 = vmatprep.subr.mxu0 0.0
    %1507 = vmatpush1.msra.mxu0 %v1477
    %1508 = vmatprep.subr.mxu0 0.0
    %1509 = vmatpush1.msra.mxu0 %v1478
    %1510 = vmatprep.subr.mxu0 0.0
    %1511 = vmatpush1.msra.mxu0 %v1479
    %1512 = vmatprep.subr.mxu0 0.0
    %1513 = vmatpush1.msra.mxu0 %v1480
    %1514 = vmatprep.subr.mxu0 0.0
    %1515 = vmatpush1.msra.mxu0 %v1481
    %1516 = vmatprep.subr.mxu0 0.0
    %1517 = vmatpush1.msra.mxu0 %v1482
    %1518 = vmatprep.subr.mxu0 0.0
    %1519 = vmatpush1.msra.mxu0 %v1483
    %1520 = vmatprep.subr.mxu0 0.0
    %1521 = vmatpush1.msra.mxu0 %v1484
    %1522 = vmatprep.subr.mxu0 0.0
    %1523 = vmatpush1.msra.mxu0 %v1485
    %1524 = vmatprep.subr.mxu0 0.0
    %1525 = vmatpush1.msra.mxu0 %v1486
    %1526 = vmatprep.subr.mxu0 0.0
    %1527 = vmatpush1.msra.mxu0 0.0
    %1528 = vmatprep.subr.mxu0 0.0
    %1529 = vmatpush1.msra.mxu0 0.0
    %1530 = vmatprep.subr.mxu0 0.0
    %1531 = vmatpush1.msra.mxu0 0.0
    %1532 = vmatprep.subr.mxu0 0.0
    %1533 = vmatpush1.msra.mxu0 0.0
    %1534 = vmatprep.subr.mxu0 0.0
    %1535 = vmatpush1.msra.mxu0 0.0
    %1536 = vmatprep.subr.mxu0 0.0
    %1537 = vmatpush1.msra.mxu0 0.0
    %1538 = vmatprep.subr.mxu0 0.0
    %1539 = vmatpush1.msra.mxu0 0.0
    %1540 = vmatprep.subr.mxu0 0.0
    %1541 = vmatpush1.msra.mxu0 0.0
    %1542 = vmatprep.subr.mxu0 0.0
    %1543 = vmatpush1.msra.mxu0 0.0
    %1544 = vmatprep.subr.mxu0 0.0
    %1545 = vmatpush1.msra.mxu0 0.0
    %1546 = vmatprep.subr.mxu0 0.0
    %1547 = vmatpush1.msra.mxu0 0.0
    %1548 = vmatprep.subr.mxu0 0.0
    %1549 = vmatpush1.msra.mxu0 0.0
    %1550 = vmatprep.subr.mxu0 0.0
    %1551 = vmatpush1.msra.mxu0 0.0
    %1552 = vmatprep.subr.mxu0 0.0
    %1553 = vmatpush1.msra.mxu0 0.0
    %1554 = vmatprep.subr.mxu0 0.0
    %1555 = vmatpush1.msra.mxu0 0.0
    %1556 = vmatprep.subr.mxu0 0.0
    %1557 = vmatpush1.msra.mxu0 0.0
    %1558 = vmatprep.mubr.f32.mxu0 0.0
    %1559 = vmatmul.mubr.f32.gmra.mrb[0].mxu0 %v1470
    %v1560 = vpop.f32.mrb[0].mxu0
    %v1561 = vadd.f32 %v1492, %v1560
    %v1562 = vpop.f32.mrb[0].mxu0
    %1563 = vdwg.mxu0
    %v1564 = vtanh.pop %v1561
    %v1565 = vld [vmem:[%s7] sm:$0xff]
    %v1566 = vld [vmem:[%s7 + $0x8] sm:$0xff]
    %v1567 = vld [vmem:[%s7 + $0x10] sm:$0xff]
    %v1568 = vld [vmem:[%s7 + $0x18] sm:$0xff]
    %v1569 = vld [vmem:[%s8] sm:$0x1]
    %v1571 = vlaneseq
    %v1572 = vshrl.u32 %v1571, 7
    %v1573 = vsub.s32 0, %v1572
    %v1574 = vrot.slane %v1569, %v1573
    %vm1576 = vcmask 261120
    %v1578 = vsel %vm1576, %v1564, 0
    %1580 = vmatprep.subr.mxu0 0.0
    %1581 = vmatpush1.msra.mxu0 %v1565
    %1582 = vmatprep.subr.mxu0 0.0
    %1583 = vmatpush1.msra.mxu0 %v1566
    %1584 = vmatprep.subr.mxu0 0.0
    %1585 = vmatpush1.msra.mxu0 %v1567
    %1586 = vmatprep.subr.mxu0 0.0
    %1587 = vmatpush1.msra.mxu0 %v1568
    %1588 = vmatprep.subr.mxu0 0.0
    %1589 = vmatpush1.msra.mxu0 0.0
    %1590 = vmatprep.subr.mxu0 0.0
    %1591 = vmatpush1.msra.mxu0 0.0
    %1592 = vmatprep.subr.mxu0 0.0
    %1593 = vmatpush1.msra.mxu0 0.0
    %1594 = vmatprep.subr.mxu0 0.0
    %1595 = vmatpush1.msra.mxu0 0.0
    %1596 = vmatprep.subr.mxu0 0.0
    %1597 = vmatpush1.msra.mxu0 0.0
    %1598 = vmatprep.subr.mxu0 0.0
    %1599 = vmatpush1.msra.mxu0 0.0
    %1600 = vmatprep.subr.mxu0 0.0
    %1601 = vmatpush1.msra.mxu0 0.0
    %1602 = vmatprep.subr.mxu0 0.0
    %1603 = vmatpush1.msra.mxu0 0.0
    %1604 = vmatprep.subr.mxu0 0.0
    %1605 = vmatpush1.msra.mxu0 0.0
    %1606 = vmatprep.subr.mxu0 0.0
    %1607 = vmatpush1.msra.mxu0 0.0
    %1608 = vmatprep.subr.mxu0 0.0
    %1609 = vmatpush1.msra.mxu0 0.0
    %1610 = vmatprep.subr.mxu0 0.0
    %1611 = vmatpush1.msra.mxu0 0.0
    %1612 = vmatprep.subr.mxu0 0.0
    %1613 = vmatpush1.msra.mxu0 0.0
    %1614 = vmatprep.subr.mxu0 0.0
    %1615 = vmatpush1.msra.mxu0 0.0
    %1616 = vmatprep.subr.mxu0 0.0
    %1617 = vmatpush1.msra.mxu0 0.0
    %1618 = vmatprep.subr.mxu0 0.0
    %1619 = vmatpush1.msra.mxu0 0.0
    %1620 = vmatprep.subr.mxu0 0.0
    %1621 = vmatpush1.msra.mxu0 0.0
    %1622 = vmatprep.subr.mxu0 0.0
    %1623 = vmatpush1.msra.mxu0 0.0
    %1624 = vmatprep.subr.mxu0 0.0
    %1625 = vmatpush1.msra.mxu0 0.0
    %1626 = vmatprep.subr.mxu0 0.0
    %1627 = vmatpush1.msra.mxu0 0.0
    %1628 = vmatprep.subr.mxu0 0.0
    %1629 = vmatpush1.msra.mxu0 0.0
    %1630 = vmatprep.subr.mxu0 0.0
    %1631 = vmatpush1.msra.mxu0 0.0
    %1632 = vmatprep.subr.mxu0 0.0
    %1633 = vmatpush1.msra.mxu0 0.0
    %1634 = vmatprep.subr.mxu0 0.0
    %1635 = vmatpush1.msra.mxu0 0.0
    %1636 = vmatprep.subr.mxu0 0.0
    %1637 = vmatpush1.msra.mxu0 0.0
    %1638 = vmatprep.subr.mxu0 0.0
    %1639 = vmatpush1.msra.mxu0 0.0
    %1640 = vmatprep.subr.mxu0 0.0
    %1641 = vmatpush1.msra.mxu0 0.0
    %1642 = vmatprep.subr.mxu0 0.0
    %1643 = vmatpush1.msra.mxu0 0.0
    %1644 = vmatprep.mubr.f32.mxu0 0.0
    %1645 = vmatmul.mubr.f32.gmra.mrb[0].mxu0 %v1578
    %v1646 = vpop.f32.mrb[0].mxu0
    %v1647 = vadd.f32 %v1574, %v1646
    %v1648 = vpop.f32.mrb[0].mxu0
    %1649 = vdwg.mxu0
    %1650 = vst [vmem:[#allocation7] sm:$0x3] %v1647
    // Predicated region
    $region42: #{cnn_forward.1} parent=1 // pred_check
      _
    $region43: #{cnn_forward.1} parent=1 // pred_check_branch
      %1652 = sbr.rel (0) target = $region45
    $region44: #{cnn_forward.1} parent=1 // pred_region
      %s1654 = ssub.s32 32, 32
      %1655 = vsyncadd [#allocation6], %s1654
      %s1657 = sshll.u32 [#allocation7], 4
      %s1658 = int_to_ptr.vmem [resolvable:$true] %s1657
      %1660 = dma.vmem_to_hbm [thread:$0]  %s1658, 32, %s9, [#allocation6]
    $region45: #{cnn_forward.1} parent=1 // pred_fallthru
      _
    // Predicated region
    $region46: #{cnn_forward.1} parent=1 // pred_check
      _
    $region47: #{cnn_forward.1} parent=1 // pred_check_branch
      %1662 = sbr.rel (0) target = $region49
    $region48: #{cnn_forward.1} parent=1 // pred_region
      %1663 = dma.done [#allocation6], 32
    $region49: #{cnn_forward.1} parent=1 // pred_fallthru
      _
    %1664 = vsyncpa [#allocation5], 1
    %1665 = vsyncpa [#allocation6], 1

</llo_original>
